<compile_context>
chip_gen: v7x
topology: tpu7x:2x2x1
jax: 0.10.0
libtpu: 0.0.40
codegen_flags: <defaults>
</compile_context>

<pallas_src>
import functools
import math

import jax
import jax.numpy as jnp
from jax import lax
from jax.experimental import pallas as pl
from jax.experimental.pallas import tpu as pltpu


def _mha_kernel(x_ref, wqkv_ref, bqkv_ref, wo_ref, bo_ref, bias_ref,
                out_ref, attnw_ref,
                qkv_ref, ctx_ref,
                *, num_heads, head_dim, seq_len, batch_block):
    H, Dh, T, BB = num_heads, head_dim, seq_len, batch_block
    E = H * Dh
    cdt = x_ref.dtype                       # MXU operand dtype (f32 or bf16)

    # Fused QKV projection: one (BB*T, E) x (E, 3E) MXU matmul, f32 accum.
    # The 1/sqrt(Dh) scaling is pre-folded into the Q third of wqkv / bqkv.
    qkv_ref[...] = (jnp.dot(x_ref[...], wqkv_ref[...],
                            preferred_element_type=jnp.float32)
                    + bqkv_ref[...]).astype(cdt)

    # Visible batch loop: bounded live ranges, no static BB x H unroll.
    @pl.loop(0, BB)
    def _(b):
        row = b * T
        if T % 8 == 0:
            row = pl.multiple_of(row, 8)
        qkv_b = qkv_ref[pl.ds(row, T), :]                 # (T, 3E) dense load

        def split_heads(off):
            # (T, H*Dh) lane slices -> (H, T, Dh): heads become a batch dim so
            # both attention matmuls are a single batched MXU op.
            return jnp.stack(
                [qkv_b[:, off + h * Dh: off + (h + 1) * Dh] for h in range(H)],
                axis=0)

        qh = split_heads(0)
        kh = split_heads(E)
        vh = split_heads(2 * E)

        # Batched (over heads) scores, f32 accumulation on the MXU.
        s = jnp.einsum('htd,hsd->hts', qh, kh,
                       preferred_element_type=jnp.float32)        # (H, T, T)
        s = s + bias_ref[b].astype(jnp.float32)

        # Softmax in f32 (VPU/EUP math stays f32 on every TPU generation).
        m = jnp.max(s, axis=-1, keepdims=True)
        p = jnp.exp(s - m)
        denom = jnp.sum(p, axis=-1, keepdims=True)
        p = p * (1.0 / denom)              # exact: rows of probs sum to 1

        # Head-mean probabilities (need_weights=True, need_head_weights=False).
        attnw_ref[pl.ds(b, 1)] = jnp.mean(p, axis=0)[None]

        # Batched context matmul, then ONE lane-dense (T, E) store.
        ctx = jnp.einsum('hts,hsd->htd', p.astype(cdt), vh,
                         preferred_element_type=jnp.float32)      # (H, T, Dh)
        ctx_b = jnp.concatenate([ctx[h] for h in range(H)], axis=-1)  # (T, E)
        ctx_ref[pl.ds(row, T), :] = ctx_b.astype(cdt)

    # Output projection over the whole batch block: (BB*T, E) x (E, E).
    out_ref[...] = (jnp.dot(ctx_ref[...], wo_ref[...],
                            preferred_element_type=jnp.float32)
                    + bo_ref[...])


def graphormer_mha(query_tbe, params, attn_bias, num_heads, *,
                   batch_block=None, compute_dtype=jnp.float32,
                   rows_target=256):
    """query_tbe: (T, B, E) f32; attn_bias: (B, H, T, T) f32.

    Returns (attn, attn_weights) of shapes (T, B, E) and (B, T, T), matching
    the PyTorch module with need_weights=True, need_head_weights=False.
    compute_dtype=jnp.bfloat16 feeds bf16 into the MXU (valid on v5e/v6e/v7x);
    softmax and accumulation stay f32.
    """
    T, B, E = query_tbe.shape
    H = num_heads
    Dh = E // H
    if H * Dh != E:
        raise ValueError("embedding_dim must be divisible by num_heads")
    scaling = Dh ** (-0.5)

    # Batch-block heuristic: fill ~rows_target MXU rows per step, but keep the
    # grid length >= 2 when B >= 2 so v7x's two TensorCores both get work, and
    # keep BB*T a multiple of 8 (sublane constraint) unless BB == B.
    if batch_block is None:
        bb = max(1, rows_target // max(T, 1))
        if B >= 2:
            bb = min(bb, B // 2)
        batch_block = max(1, min(bb, B))

    def _ok(bb):
        return bb >= 1 and B % bb == 0 and ((bb * T) % 8 == 0 or bb == B)

    while batch_block > 1 and not _ok(batch_block):
        batch_block -= 1
    if not _ok(batch_block):
        batch_block = B                  # fall back to one full-batch block
    BB = batch_block
    G = B // BB

    wq, bq, wk, bk, wv, bv, wo, bo = params          # weights are (in, out)

    # Fuse QKV into one (E, 3E) weight / (1, 3E) bias; fold scaling into Q.
    wqkv = jnp.concatenate([wq * scaling, wk, wv], axis=1).astype(compute_dtype)
    bqkv = jnp.concatenate([bq * scaling, bk, bv], axis=1).astype(jnp.float32)
    wo_c = wo.astype(compute_dtype)
    bo_c = bo.astype(jnp.float32)

    # (T, B, E) -> (B*T, E) batch-major rows; MXU operands in compute_dtype.
    x = jnp.transpose(query_tbe, (1, 0, 2)).reshape(B * T, E).astype(compute_dtype)
    bias = attn_bias.astype(compute_dtype)   # halves bias DMA on bf16 paths

    kernel = functools.partial(_mha_kernel, num_heads=H, head_dim=Dh,
                               seq_len=T, batch_block=BB)

    out_flat, attnw = pl.pallas_call(
        kernel,
        grid=(G,),
        in_specs=[
            pl.BlockSpec((BB * T, E), lambda g: (g, 0)),           # x rows
            pl.BlockSpec((E, 3 * E), lambda g: (0, 0)),            # fused Wqkv
            pl.BlockSpec((1, 3 * E), lambda g: (0, 0)),            # fused bqkv
            pl.BlockSpec((E, E), lambda g: (0, 0)),                # Wo
            pl.BlockSpec((1, E), lambda g: (0, 0)),                # bo
            pl.BlockSpec((BB, H, T, T), lambda g: (g, 0, 0, 0)),   # attn_bias
        ],
        out_specs=[
            pl.BlockSpec((BB * T, E), lambda g: (g, 0)),           # attn slab
            pl.BlockSpec((BB, T, T), lambda g: (g, 0, 0)),         # head-mean probs
        ],
        out_shape=(
            jax.ShapeDtypeStruct((B * T, E), jnp.float32),
            jax.ShapeDtypeStruct((B, T, T), jnp.float32),
        ),
        scratch_shapes=[
            pltpu.VMEM((BB * T, 3 * E), compute_dtype),   # q|k|v slab
            pltpu.VMEM((BB * T, E), compute_dtype),       # context slab
        ],
        compiler_params=pltpu.CompilerParams(
            dimension_semantics=("parallel",),
            vmem_limit_bytes=64 * 1024 * 1024,
        ),
    )(x, wqkv, bqkv, wo_c, bo_c, bias)

    attn = jnp.transpose(out_flat.reshape(B, T, E), (1, 0, 2))     # (T, B, E)
    return attn, attnw


def _reference(query_tbe, params, attn_bias, num_heads):
    """Plain-JAX reference mirroring the PyTorch forward (f32)."""
    T, B, E = query_tbe.shape
    H = num_heads
    Dh = E // H
    scaling = Dh ** (-0.5)
    wq, bq, wk, bk, wv, bv, wo, bo = params
    x = query_tbe.reshape(T * B, E)
    q = (x @ wq + bq[0]) * scaling
    k = x @ wk + bk[0]
    v = x @ wv + bv[0]

    def split(z):
        # (T*B, E) -> (T, B*H, Dh) -> (B*H, T, Dh)
        return z.reshape(T, B * H, Dh).transpose(1, 0, 2)

    qh, kh, vh = split(q), split(k), split(v)
    scores = jnp.einsum('ntd,nsd->nts', qh, kh)
    scores = scores + attn_bias.reshape(B * H, T, T)
    probs = jax.nn.softmax(scores, axis=-1)
    ctx = jnp.einsum('nts,nsd->ntd', probs, vh)                 # (B*H, T, Dh)
    ctx = ctx.transpose(1, 0, 2).reshape(T, B, E)
    attn = ctx.reshape(T * B, E) @ wo + bo[0]
    attn = attn.reshape(T, B, E)
    aw = probs.reshape(B, H, T, T).mean(axis=1)
    return attn, aw


def _xavier_uniform(key, shape_out_in, gain):
    fan_out, fan_in = shape_out_in
    a = gain * math.sqrt(6.0 / (fan_in + fan_out))
    return jax.random.uniform(key, shape_out_in, jnp.float32, -a, a)


if __name__ == "__main__":
    # Config: embedding_dim=32, num_heads=4, bias=True, attention_dropout=0.
    T, B, E, H = 8, 2, 32, 4

    key = jax.random.PRNGKey(0)
    keys = jax.random.split(key, 8)

    gain = 1.0 / math.sqrt(2.0)   # qkv_same_dim path of reset_parameters()
    # PyTorch Linear weight is (out, in); transpose to (in, out) for x @ W.
    wq = _xavier_uniform(keys[0], (E, E), gain).T
    wk = _xavier_uniform(keys[1], (E, E), gain).T
    wv = _xavier_uniform(keys[2], (E, E), gain).T
    wo = _xavier_uniform(keys[3], (E, E), 1.0).T
    bq = 0.01 * jax.random.normal(keys[4], (1, E), jnp.float32)
    bk = 0.01 * jax.random.normal(keys[5], (1, E), jnp.float32)
    bv = 0.01 * jax.random.normal(keys[6], (1, E), jnp.float32)
    bo = jnp.zeros((1, E), jnp.float32)   # out_proj bias init to 0
    params = (wq, bq, wk, bk, wv, bv, wo, bo)

    qkey, bkey = jax.random.split(jax.random.PRNGKey(1))
    query = jax.random.normal(qkey, (T, B, E), jnp.float32)
    attn_bias = 0.5 * jax.random.normal(bkey, (B, H, T, T), jnp.float32)

    ref_attn, ref_w = _reference(query, params, attn_bias, H)

    # f32 compute path.
    attn, attn_weights = graphormer_mha(query, params, attn_bias, H)
    attn = jax.block_until_ready(attn)
    attn_weights = jax.block_until_ready(attn_weights)
    assert attn.shape == (T, B, E)
    assert attn_weights.shape == (B, T, T)
    assert jnp.max(jnp.abs(attn - ref_attn)) < 1e-2
    assert jnp.max(jnp.abs(attn_weights - ref_w)) < 5e-3

    # bf16 MXU-operand path (valid on v5e/v6e/v7x); softmax/accum stay f32.
    attn_bf, w_bf = graphormer_mha(query, params, attn_bias, H,
                                   compute_dtype=jnp.bfloat16)
    attn_bf = jax.block_until_ready(attn_bf)
    w_bf = jax.block_until_ready(w_bf)
    assert jnp.max(jnp.abs(attn_bf - ref_attn)) < 1e-1
    assert jnp.max(jnp.abs(w_bf - ref_w)) < 3e-2

    print("KERNEL_OK")
</pallas_src>

<mosaic_0001>
module attributes {stable_mosaic.version = 11 : i64} {
  func.func @_mha_kernel(%arg0: i32, %arg1: memref<8x32xf32, #tpu.memory_space<vmem>>, %arg2: memref<32x96xf32, #tpu.memory_space<vmem>>, %arg3: memref<1x96xf32, #tpu.memory_space<vmem>>, %arg4: memref<32x32xf32, #tpu.memory_space<vmem>>, %arg5: memref<1x32xf32, #tpu.memory_space<vmem>>, %arg6: memref<1x4x8x8xf32, #tpu.memory_space<vmem>>, %arg7: memref<8x32xf32, #tpu.memory_space<vmem>>, %arg8: memref<1x8x8xf32, #tpu.memory_space<vmem>>, %arg9: memref<8x96xf32, #tpu.memory_space<vmem>>, %arg10: memref<8x32xf32, #tpu.memory_space<vmem>>) attributes {dimension_semantics = [#tpu.dimension_semantics<parallel>], iteration_bounds = array<i64: 2>, scalar_prefetch = 0 : i64, scratch_operands = 2 : i64, tpu.core_type = #tpu.core_type<tc>, window_params = [{transform_indices = @transform_0, window_bounds = array<i64: 8, 32>}, {pipeline_mode = #tpu.pipeline_mode<synchronous>, transform_indices = @transform_1, window_bounds = array<i64: 32, 96>}, {pipeline_mode = #tpu.pipeline_mode<synchronous>, transform_indices = @transform_2, window_bounds = array<i64: 1, 96>}, {pipeline_mode = #tpu.pipeline_mode<synchronous>, transform_indices = @transform_3, window_bounds = array<i64: 32, 32>}, {pipeline_mode = #tpu.pipeline_mode<synchronous>, transform_indices = @transform_4, window_bounds = array<i64: 1, 32>}, {transform_indices = @transform_5, window_bounds = array<i64: 1, 4, 8, 8>}, {transform_indices = @transform_6, window_bounds = array<i64: 8, 32>}, {transform_indices = @transform_7, window_bounds = array<i64: 1, 8, 8>}]} {
    %c0 = arith.constant 0 : index
    %c0_0 = arith.constant 0 : index
    %0 = vector.load %arg1[%c0, %c0_0] : memref<8x32xf32, #tpu.memory_space<vmem>>, vector<8x32xf32>
    %c0_1 = arith.constant 0 : index
    %c0_2 = arith.constant 0 : index
    %1 = vector.load %arg2[%c0_1, %c0_2] : memref<32x96xf32, #tpu.memory_space<vmem>>, vector<32x96xf32>
    %cst = arith.constant dense<0.000000e+00> : vector<8x96xf32>
    %2 = tpu.matmul %0, %1, %cst {dimension_numbers = #tpu.dot_dimension_numbers<[1], [0], [0], [1], [0, 0, 1, 1], [], []>} : vector<8x32xf32>, vector<32x96xf32>, vector<8x96xf32> -> vector<8x96xf32>
    %c0_3 = arith.constant 0 : index
    %c0_4 = arith.constant 0 : index
    %3 = vector.load %arg3[%c0_3, %c0_4] : memref<1x96xf32, #tpu.memory_space<vmem>>, vector<1x96xf32>
    %4 = vector.broadcast %3 : vector<1x96xf32> to vector<8x96xf32>
    %5 = arith.addf %2, %4 : vector<8x96xf32>
    %c0_5 = arith.constant 0 : index
    %c0_6 = arith.constant 0 : index
    %6 = vector.load %arg9[%c0_5, %c0_6] : memref<8x96xf32, #tpu.memory_space<vmem>>, vector<8x96xf32>
    tpu.vector_store %arg9[%c0_5, %c0_6], %5 {strides = array<i32>} : memref<8x96xf32, #tpu.memory_space<vmem>>, vector<8x96xf32>,
    %c0_i32 = arith.constant 0 : i32
    %c1_i32 = arith.constant 1 : i32
    %7 = arith.muli %c0_i32, %c1_i32 : i32
    %c0_i32_7 = arith.constant 0 : i32
    %8 = arith.addi %c0_i32_7, %7 : i32
    %c8_i32 = arith.constant 8 : i32
    %9 = arith.muli %8, %c8_i32 : i32
    %10 = tpu.assume_multiple %9, 8 : i32
    %11 = arith.index_cast %10 : i32 to index
    %c0_8 = arith.constant 0 : index
    %12 = vector.load %arg9[%11, %c0_8] : memref<8x96xf32, #tpu.memory_space<vmem>>, vector<8x96xf32>
    %13 = vector.extract_strided_slice %12 {offsets = [0, 0], sizes = [8, 8], strides = [1, 1]} : vector<8x96xf32> to vector<8x8xf32>
    %14 = vector.extract_strided_slice %12 {offsets = [0, 8], sizes = [8, 8], strides = [1, 1]} : vector<8x96xf32> to vector<8x8xf32>
    %15 = vector.extract_strided_slice %12 {offsets = [0, 16], sizes = [8, 8], strides = [1, 1]} : vector<8x96xf32> to vector<8x8xf32>
    %16 = vector.extract_strided_slice %12 {offsets = [0, 24], sizes = [8, 8], strides = [1, 1]} : vector<8x96xf32> to vector<8x8xf32>
    %17 = vector.shape_cast %13 : vector<8x8xf32> to vector<1x8x8xf32>
    %18 = vector.shape_cast %14 : vector<8x8xf32> to vector<1x8x8xf32>
    %19 = vector.shape_cast %15 : vector<8x8xf32> to vector<1x8x8xf32>
    %20 = vector.shape_cast %16 : vector<8x8xf32> to vector<1x8x8xf32>
    %21 = tpu.concatenate %17, %18, %19, %20 in 0 : vector<1x8x8xf32>, vector<1x8x8xf32>, vector<1x8x8xf32>, vector<1x8x8xf32> -> vector<4x8x8xf32>
    %22 = vector.extract_strided_slice %12 {offsets = [0, 32], sizes = [8, 8], strides = [1, 1]} : vector<8x96xf32> to vector<8x8xf32>
    %23 = vector.extract_strided_slice %12 {offsets = [0, 40], sizes = [8, 8], strides = [1, 1]} : vector<8x96xf32> to vector<8x8xf32>
    %24 = vector.extract_strided_slice %12 {offsets = [0, 48], sizes = [8, 8], strides = [1, 1]} : vector<8x96xf32> to vector<8x8xf32>
    %25 = vector.extract_strided_slice %12 {offsets = [0, 56], sizes = [8, 8], strides = [1, 1]} : vector<8x96xf32> to vector<8x8xf32>
    %26 = vector.shape_cast %22 : vector<8x8xf32> to vector<1x8x8xf32>
    %27 = vector.shape_cast %23 : vector<8x8xf32> to vector<1x8x8xf32>
    %28 = vector.shape_cast %24 : vector<8x8xf32> to vector<1x8x8xf32>
    %29 = vector.shape_cast %25 : vector<8x8xf32> to vector<1x8x8xf32>
    %30 = tpu.concatenate %26, %27, %28, %29 in 0 : vector<1x8x8xf32>, vector<1x8x8xf32>, vector<1x8x8xf32>, vector<1x8x8xf32> -> vector<4x8x8xf32>
    %31 = vector.extract_strided_slice %12 {offsets = [0, 64], sizes = [8, 8], strides = [1, 1]} : vector<8x96xf32> to vector<8x8xf32>
    %32 = vector.extract_strided_slice %12 {offsets = [0, 72], sizes = [8, 8], strides = [1, 1]} : vector<8x96xf32> to vector<8x8xf32>
    %33 = vector.extract_strided_slice %12 {offsets = [0, 80], sizes = [8, 8], strides = [1, 1]} : vector<8x96xf32> to vector<8x8xf32>
    %34 = vector.extract_strided_slice %12 {offsets = [0, 88], sizes = [8, 8], strides = [1, 1]} : vector<8x96xf32> to vector<8x8xf32>
    %35 = vector.shape_cast %31 : vector<8x8xf32> to vector<1x8x8xf32>
    %36 = vector.shape_cast %32 : vector<8x8xf32> to vector<1x8x8xf32>
    %37 = vector.shape_cast %33 : vector<8x8xf32> to vector<1x8x8xf32>
    %38 = vector.shape_cast %34 : vector<8x8xf32> to vector<1x8x8xf32>
    %39 = tpu.concatenate %35, %36, %37, %38 in 0 : vector<1x8x8xf32>, vector<1x8x8xf32>, vector<1x8x8xf32>, vector<1x8x8xf32> -> vector<4x8x8xf32>
    "tpu.trace_start"() <{level = 10 : i32, message = "htd,hsd->hts"}> : () -> ()
    %cst_9 = arith.constant dense<0.000000e+00> : vector<4x8x8xf32>
    %40 = tpu.matmul %21, %30, %cst_9 {dimension_numbers = #tpu.dot_dimension_numbers<[2], [2], [1], [1], [0, 0, 0, 1, 1, 1], [0], [0]>} : vector<4x8x8xf32>, vector<4x8x8xf32>, vector<4x8x8xf32> -> vector<4x8x8xf32>
    "tpu.trace_stop"() : () -> ()
    %41 = arith.index_cast %8 : i32 to index
    %c0_10 = arith.constant 0 : index
    %c0_11 = arith.constant 0 : index
    %c0_12 = arith.constant 0 : index
    %42 = vector.load %arg6[%41, %c0_10, %c0_11, %c0_12] : memref<1x4x8x8xf32, #tpu.memory_space<vmem>>, vector<1x4x8x8xf32>
    %43 = vector.shape_cast %42 : vector<1x4x8x8xf32> to vector<4x8x8xf32>
    %44 = arith.addf %40, %43 : vector<4x8x8xf32>
    %cst_13 = arith.constant dense<0xFF800000> : vector<4x8xf32>
    %45 = vector.multi_reduction <maximumf>, %44, %cst_13 [2] : vector<4x8x8xf32> to vector<4x8xf32>
    %46 = vector.shape_cast %45 : vector<4x8xf32> to vector<4x8x1xf32>
    %47 = vector.broadcast %46 : vector<4x8x1xf32> to vector<4x8x8xf32>
    %48 = arith.subf %44, %47 : vector<4x8x8xf32>
    %49 = math.exp %48 : vector<4x8x8xf32>
    %cst_14 = arith.constant dense<0.000000e+00> : vector<4x8xf32>
    %50 = vector.multi_reduction <add>, %49, %cst_14 [2] : vector<4x8x8xf32> to vector<4x8xf32>
    %51 = vector.shape_cast %50 : vector<4x8xf32> to vector<4x8x1xf32>
    %cst_15 = arith.constant 1.000000e+00 : f32
    %52 = vector.broadcast %cst_15 : f32 to vector<4x8x1xf32>
    %53 = arith.divf %52, %51 : vector<4x8x1xf32>
    %54 = vector.broadcast %53 : vector<4x8x1xf32> to vector<4x8x8xf32>
    %55 = arith.mulf %49, %54 : vector<4x8x8xf32>
    %cst_16 = arith.constant dense<0.000000e+00> : vector<8x8xf32>
    %56 = vector.multi_reduction <add>, %55, %cst_16 [0] : vector<4x8x8xf32> to vector<8x8xf32>
    %cst_17 = arith.constant 4.000000e+00 : f32
    %57 = vector.broadcast %cst_17 : f32 to vector<8x8xf32>
    %58 = arith.divf %56, %57 : vector<8x8xf32>
    %59 = vector.shape_cast %58 : vector<8x8xf32> to vector<1x8x8xf32>
    %60 = arith.index_cast %8 : i32 to index
    %c0_18 = arith.constant 0 : index
    %c0_19 = arith.constant 0 : index
    %61 = vector.load %arg8[%60, %c0_18, %c0_19] : memref<1x8x8xf32, #tpu.memory_space<vmem>>, vector<1x8x8xf32>
    tpu.vector_store %arg8[%60, %c0_18, %c0_19], %59 {strides = array<i32>} : memref<1x8x8xf32, #tpu.memory_space<vmem>>, vector<1x8x8xf32>,
    "tpu.trace_start"() <{level = 10 : i32, message = "hts,hsd->htd"}> : () -> ()
    %cst_20 = arith.constant dense<0.000000e+00> : vector<4x8x8xf32>
    %62 = tpu.matmul %55, %39, %cst_20 {dimension_numbers = #tpu.dot_dimension_numbers<[2], [1], [1], [2], [0, 0, 0, 1, 1, 2], [0], [0]>} : vector<4x8x8xf32>, vector<4x8x8xf32>, vector<4x8x8xf32> -> vector<4x8x8xf32>
    "tpu.trace_stop"() : () -> ()
    %63 = vector.extract_strided_slice %62 {offsets = [0, 0, 0], sizes = [1, 8, 8], strides = [1, 1, 1]} : vector<4x8x8xf32> to vector<1x8x8xf32>
    %64 = vector.shape_cast %63 : vector<1x8x8xf32> to vector<8x8xf32>
    %65 = vector.extract_strided_slice %62 {offsets = [1, 0, 0], sizes = [1, 8, 8], strides = [1, 1, 1]} : vector<4x8x8xf32> to vector<1x8x8xf32>
    %66 = vector.shape_cast %65 : vector<1x8x8xf32> to vector<8x8xf32>
    %67 = vector.extract_strided_slice %62 {offsets = [2, 0, 0], sizes = [1, 8, 8], strides = [1, 1, 1]} : vector<4x8x8xf32> to vector<1x8x8xf32>
    %68 = vector.shape_cast %67 : vector<1x8x8xf32> to vector<8x8xf32>
    %69 = vector.extract_strided_slice %62 {offsets = [3, 0, 0], sizes = [1, 8, 8], strides = [1, 1, 1]} : vector<4x8x8xf32> to vector<1x8x8xf32>
    %70 = vector.shape_cast %69 : vector<1x8x8xf32> to vector<8x8xf32>
    %71 = tpu.concatenate %64, %66, %68, %70 in 1 : vector<8x8xf32>, vector<8x8xf32>, vector<8x8xf32>, vector<8x8xf32> -> vector<8x32xf32>
    %72 = arith.index_cast %10 : i32 to index
    %c0_21 = arith.constant 0 : index
    %73 = vector.load %arg10[%72, %c0_21] : memref<8x32xf32, #tpu.memory_space<vmem>>, vector<8x32xf32>
    tpu.vector_store %arg10[%72, %c0_21], %71 {strides = array<i32>} : memref<8x32xf32, #tpu.memory_space<vmem>>, vector<8x32xf32>,
    %c1_i32_22 = arith.constant 1 : i32
    %c0_23 = arith.constant 0 : index
    %c0_24 = arith.constant 0 : index
    %74 = vector.load %arg10[%c0_23, %c0_24] : memref<8x32xf32, #tpu.memory_space<vmem>>, vector<8x32xf32>
    %c0_25 = arith.constant 0 : index
    %c0_26 = arith.constant 0 : index
    %75 = vector.load %arg4[%c0_25, %c0_26] : memref<32x32xf32, #tpu.memory_space<vmem>>, vector<32x32xf32>
    %cst_27 = arith.constant dense<0.000000e+00> : vector<8x32xf32>
    %76 = tpu.matmul %74, %75, %cst_27 {dimension_numbers = #tpu.dot_dimension_numbers<[1], [0], [0], [1], [0, 0, 1, 1], [], []>} : vector<8x32xf32>, vector<32x32xf32>, vector<8x32xf32> -> vector<8x32xf32>
    %c0_28 = arith.constant 0 : index
    %c0_29 = arith.constant 0 : index
    %77 = vector.load %arg5[%c0_28, %c0_29] : memref<1x32xf32, #tpu.memory_space<vmem>>, vector<1x32xf32>
    %78 = vector.broadcast %77 : vector<1x32xf32> to vector<8x32xf32>
    %79 = arith.addf %76, %78 : vector<8x32xf32>
    %c0_30 = arith.constant 0 : index
    %c0_31 = arith.constant 0 : index
    %80 = vector.load %arg7[%c0_30, %c0_31] : memref<8x32xf32, #tpu.memory_space<vmem>>, vector<8x32xf32>
    tpu.vector_store %arg7[%c0_30, %c0_31], %79 {strides = array<i32>} : memref<8x32xf32, #tpu.memory_space<vmem>>, vector<8x32xf32>,
    return
  }
  func.func @transform_0(%arg0: i32) -> (i32, i32) {
    %c0_i32 = arith.constant 0 : i32
    %c0_i32_0 = arith.constant 0 : i32
    return %arg0, %c0_i32 : i32, i32
  }
  func.func @transform_1(%arg0: i32) -> (i32, i32) {
    %c0_i32 = arith.constant 0 : i32
    %c0_i32_0 = arith.constant 0 : i32
    %c0_i32_1 = arith.constant 0 : i32
    return %c0_i32, %c0_i32_0 : i32, i32
  }
  func.func @transform_2(%arg0: i32) -> (i32, i32) {
    %c0_i32 = arith.constant 0 : i32
    %c0_i32_0 = arith.constant 0 : i32
    %c0_i32_1 = arith.constant 0 : i32
    return %c0_i32, %c0_i32_0 : i32, i32
  }
  func.func @transform_3(%arg0: i32) -> (i32, i32) {
    %c0_i32 = arith.constant 0 : i32
    %c0_i32_0 = arith.constant 0 : i32
    %c0_i32_1 = arith.constant 0 : i32
    return %c0_i32, %c0_i32_0 : i32, i32
  }
  func.func @transform_4(%arg0: i32) -> (i32, i32) {
    %c0_i32 = arith.constant 0 : i32
    %c0_i32_0 = arith.constant 0 : i32
    %c0_i32_1 = arith.constant 0 : i32
    return %c0_i32, %c0_i32_0 : i32, i32
  }
  func.func @transform_5(%arg0: i32) -> (i32, i32, i32, i32) {
    %c0_i32 = arith.constant 0 : i32
    %c0_i32_0 = arith.constant 0 : i32
    %c0_i32_1 = arith.constant 0 : i32
    %c0_i32_2 = arith.constant 0 : i32
    return %arg0, %c0_i32, %c0_i32_0, %c0_i32_1 : i32, i32, i32, i32
  }
  func.func @transform_6(%arg0: i32) -> (i32, i32) {
    %c0_i32 = arith.constant 0 : i32
    %c0_i32_0 = arith.constant 0 : i32
    return %arg0, %c0_i32 : i32, i32
  }
  func.func @transform_7(%arg0: i32) -> (i32, i32, i32) {
    %c0_i32 = arith.constant 0 : i32
    %c0_i32_0 = arith.constant 0 : i32
    %c0_i32_1 = arith.constant 0 : i32
    return %arg0, %c0_i32, %c0_i32_0 : i32, i32, i32
  }
}

</mosaic_0001>

<llo_original>
// kernel: tpu_custom_call.1
$region0: #{tpu_custom_call.1}
  #allocation0 [shape = 'u32[]', space=smem, size = 0x4, offset = 0x4, fixed_abs, tag = 'smem constant byte address 0x4 - core index']
  #allocation1 [shape = 'u32[144,128]{1,0:T(1,128)}', space=vmem, size = 0x12000, scoped, tag = 'internal scratch']
  #allocation2 [shape = 'f32[8,96]{1,0:T(8,128)}', space=vmem, size = 0x1000, scoped, tag = 'scratch operand']
  #allocation3 [shape = 'f32[8,32]{1,0:T(8,128)}', space=vmem, size = 0x1000, scoped, tag = 'scratch operand']
  %s0 = inlined_call_operand.hbm [shape: f32[16,32], index: 0, kind: input, shape index: {}]
  %s1 = inlined_call_operand.hbm [shape: f32[32,96], index: 1, kind: input, shape index: {}]
  %s2 = inlined_call_operand.hbm [shape: f32[1,96], index: 2, kind: input, shape index: {}]
  %s3 = inlined_call_operand.hbm [shape: f32[32,32], index: 3, kind: input, shape index: {}]
  %s4 = inlined_call_operand.hbm [shape: f32[1,32], index: 4, kind: input, shape index: {}]
  %s5 = inlined_call_operand.hbm [shape: f32[2,4,8,8], index: 5, kind: input, shape index: {}]
  %s6 = inlined_call_operand.hbm [shape: f32[16,32], index: 6, kind: output, shape index: {0}]
  %s7 = inlined_call_operand.hbm [shape: f32[2,8,8], index: 7, kind: output, shape index: {1}]
  %8 = xla_tuple %s6, %s7
  %s9 = sld [smem:[#allocation0]]
  $region89: #{tpu_custom_call.1} parent=0
    _
  %s11 = ssub.s32 1, %s9
  %s12 = scalar_select 0, %s11, %s9
  $region1: #{tpu_custom_call.1} parent=0
    #allocation4 [shape = 'u8[8192]{0}', space=vmem, size = 0x2000, scoped, tag = 'input window, operand 0']
    #allocation5 [shape = 's32[2]{0}', space=sflag, size = 0x8, scoped, tag = 'scoped memory for tpu_custom_call.1']
    #allocation6 [shape = 's32[2]{0}', space=sflag, size = 0x8, scoped, tag = 'scoped memory for tpu_custom_call.1']
    #allocation7 [shape = 'u8[16384]{0}', space=vmem, size = 0x4000, scoped, tag = 'input window, operand 1, single buffered']
    #allocation8 [shape = 's32[1]{0}', space=sflag, size = 0x4, scoped, tag = 'scoped memory for tpu_custom_call.1']
    #allocation9 [shape = 'u8[512]{0}', space=vmem, size = 0x400, scoped, tag = 'input window, operand 2, single buffered']
    #allocation10 [shape = 'u8[16384]{0}', space=vmem, size = 0x4000, scoped, tag = 'input window, operand 3, single buffered']
    #allocation11 [shape = 's32[1]{0}', space=sflag, size = 0x4, scoped, tag = 'scoped memory for tpu_custom_call.1']
    #allocation12 [shape = 'u8[512]{0}', space=vmem, size = 0x400, scoped, tag = 'input window, operand 4, single buffered']
    #allocation13 [shape = 'u8[32768]{0}', space=vmem, size = 0x8000, scoped, tag = 'input window, operand 5']
    #allocation14 [shape = 's32[2]{0}', space=sflag, size = 0x8, scoped, tag = 'scoped memory for tpu_custom_call.1']
    #allocation15 [shape = 'u8[8192]{0}', space=vmem, size = 0x2000, scoped, tag = 'output window, operand 0']
    #allocation16 [shape = 'u8[8192]{0}', space=vmem, size = 0x2000, scoped, tag = 'output window, operand 1']
    #allocation17 [shape = 's32[2]{0}', space=sflag, size = 0x8, scoped, tag = 'scoped memory for tpu_custom_call.1']
    %13 = vsyncpa [#allocation5], 0
    %s14 = scalar_lea.sflag [#allocation5], 1
    %15 = vsyncpa %s14, 0
    %16 = vsyncpa [#allocation8], 0
    %17 = vsyncpa [#allocation11], 0
    %18 = vsyncpa [#allocation14], 0
    %s19 = scalar_lea.sflag [#allocation14], 1
    %20 = vsyncpa %s19, 0
    %21 = vsyncpa [#allocation6], 0
    %s22 = scalar_lea.sflag [#allocation6], 1
    %23 = vsyncpa %s22, 0
    %24 = vsyncpa [#allocation17], 0
    %s25 = scalar_lea.sflag [#allocation17], 1
    %26 = vsyncpa %s25, 0
    loop: start=0, step=1, limit=4
    $region2: #{tpu_custom_call.1} parent=1 // loop_pre_header
      _
    $region3: #{tpu_custom_call.1} parent=1 // loop_header
      %s28 = sphi 0, %s32
      %p29 = scmp.ge.s32.totalorder %s28, 4
      %s38 = sphi 0, %s40
      %s41 = sphi 0, %s38
      %s42 = sphi 0, %s41
      %s58 = sphi 0, %s42
      %s62 = sphi 0, %s62
      %s64 = sphi 0, %s62
      %s65 = sphi 0, %s64
      %s79 = sphi 0, %s65
      %s83 = sphi 0, %s83
      %s85 = sphi 0, %s83
      %s86 = sphi 0, %s85
      %s100 = sphi 0, %s86
      %s104 = sphi 0, %s104
      %s106 = sphi 0, %s104
      %s107 = sphi 0, %s106
      %s121 = sphi 0, %s107
      %s125 = sphi 0, %s125
      %s127 = sphi 0, %s125
      %s128 = sphi 0, %s127
      %s142 = sphi 0, %s128
      %s148 = sphi 0, %s150
      %s151 = sphi 0, %s148
      %s152 = sphi 0, %s151
      %s168 = sphi 0, %s152
      %s174 = sphi 0, %s176
      %s177 = sphi 0, %s174
      %s178 = sphi 0, %s177
      %s194 = sphi 0, %s178
      %s200 = sphi 0, %s202
      %s203 = sphi 0, %s200
      %s204 = sphi 0, %s203
      %s220 = sphi 0, %s204
    $region4: #{tpu_custom_call.1} parent=1 // loop_header_branch
      %31 = sbr.rel (%p29) target = $region8
    $region5: #{tpu_custom_call.1} parent=1 // loop_body
      %s33 = ssub.s32 %s28, 1
      %s34 = ssub.s32 %s28, 2
      %s35 = sadd.s32 %s28, 1
      %s36 = ssub.s32 %s28, %s35
      %p37 = scmp.eq.s32.totalorder %s36, 0
      %s39 = sadd.s32 %s38, 1
      %s40 = scalar_select %p37, %s38, %s39
      %p43 = pneg %p37
      %p44 = scmp.eq.s32.totalorder %s28, 1
      %p45 = por %p43, %p44
      %p46 = scmp.ne.s32.totalorder %s38, %s41
      %p47 = scmp.eq.s32.totalorder %s28, 0
      %p48 = por %p46, %p47
      %p49 = scmp.ne.s32.totalorder %s38, %s41
      %p50 = scmp.eq.s32.totalorder %s33, 1
      %p51 = por %p49, %p50
      %p52 = scmp.ne.s32.totalorder %s41, %s42
      %p53 = scmp.eq.s32.totalorder %s33, 0
      %p54 = por %p52, %p53
      %p55 = scmp.ne.s32.totalorder %s41, %s42
      %p56 = scmp.eq.s32.totalorder %s34, 1
      %p57 = por %p55, %p56
      %p59 = scmp.ne.s32.totalorder %s42, %s58
      %p60 = scmp.eq.s32.totalorder %s34, 0
      %p61 = por %p59, %p60
      %s63 = sadd.s32 %s62, 1
      %p66 = scmp.eq.s32.totalorder %s28, 1
      %p67 = scmp.ne.s32.totalorder %s62, %s64
      %p68 = scmp.eq.s32.totalorder %s28, 0
      %p69 = por %p67, %p68
      %p70 = scmp.ne.s32.totalorder %s62, %s64
      %p71 = scmp.eq.s32.totalorder %s33, 1
      %p72 = por %p70, %p71
      %p73 = scmp.ne.s32.totalorder %s64, %s65
      %p74 = scmp.eq.s32.totalorder %s33, 0
      %p75 = por %p73, %p74
      %p76 = scmp.ne.s32.totalorder %s64, %s65
      %p77 = scmp.eq.s32.totalorder %s34, 1
      %p78 = por %p76, %p77
      %p80 = scmp.ne.s32.totalorder %s65, %s79
      %p81 = scmp.eq.s32.totalorder %s34, 0
      %p82 = por %p80, %p81
      %s84 = sadd.s32 %s83, 1
      %p87 = scmp.eq.s32.totalorder %s28, 1
      %p88 = scmp.ne.s32.totalorder %s83, %s85
      %p89 = scmp.eq.s32.totalorder %s28, 0
      %p90 = por %p88, %p89
      %p91 = scmp.ne.s32.totalorder %s83, %s85
      %p92 = scmp.eq.s32.totalorder %s33, 1
      %p93 = por %p91, %p92
      %p94 = scmp.ne.s32.totalorder %s85, %s86
      %p95 = scmp.eq.s32.totalorder %s33, 0
      %p96 = por %p94, %p95
      %p97 = scmp.ne.s32.totalorder %s85, %s86
      %p98 = scmp.eq.s32.totalorder %s34, 1
      %p99 = por %p97, %p98
      %p101 = scmp.ne.s32.totalorder %s86, %s100
      %p102 = scmp.eq.s32.totalorder %s34, 0
      %p103 = por %p101, %p102
      %s105 = sadd.s32 %s104, 1
      %p108 = scmp.eq.s32.totalorder %s28, 1
      %p109 = scmp.ne.s32.totalorder %s104, %s106
      %p110 = scmp.eq.s32.totalorder %s28, 0
      %p111 = por %p109, %p110
      %p112 = scmp.ne.s32.totalorder %s104, %s106
      %p113 = scmp.eq.s32.totalorder %s33, 1
      %p114 = por %p112, %p113
      %p115 = scmp.ne.s32.totalorder %s106, %s107
      %p116 = scmp.eq.s32.totalorder %s33, 0
      %p117 = por %p115, %p116
      %p118 = scmp.ne.s32.totalorder %s106, %s107
      %p119 = scmp.eq.s32.totalorder %s34, 1
      %p120 = por %p118, %p119
      %p122 = scmp.ne.s32.totalorder %s107, %s121
      %p123 = scmp.eq.s32.totalorder %s34, 0
      %p124 = por %p122, %p123
      %s126 = sadd.s32 %s125, 1
      %p129 = scmp.eq.s32.totalorder %s28, 1
      %p130 = scmp.ne.s32.totalorder %s125, %s127
      %p131 = scmp.eq.s32.totalorder %s28, 0
      %p132 = por %p130, %p131
      %p133 = scmp.ne.s32.totalorder %s125, %s127
      %p134 = scmp.eq.s32.totalorder %s33, 1
      %p135 = por %p133, %p134
      %p136 = scmp.ne.s32.totalorder %s127, %s128
      %p137 = scmp.eq.s32.totalorder %s33, 0
      %p138 = por %p136, %p137
      %p139 = scmp.ne.s32.totalorder %s127, %s128
      %p140 = scmp.eq.s32.totalorder %s34, 1
      %p141 = por %p139, %p140
      %p143 = scmp.ne.s32.totalorder %s128, %s142
      %p144 = scmp.eq.s32.totalorder %s34, 0
      %p145 = por %p143, %p144
      %s146 = ssub.s32 %s28, %s35
      %p147 = scmp.eq.s32.totalorder %s146, 0
      %s149 = sadd.s32 %s148, 1
      %s150 = scalar_select %p147, %s148, %s149
      %p153 = pneg %p147
      %p154 = scmp.eq.s32.totalorder %s28, 1
      %p155 = por %p153, %p154
      %p156 = scmp.ne.s32.totalorder %s148, %s151
      %p157 = scmp.eq.s32.totalorder %s28, 0
      %p158 = por %p156, %p157
      %p159 = scmp.ne.s32.totalorder %s148, %s151
      %p160 = scmp.eq.s32.totalorder %s33, 1
      %p161 = por %p159, %p160
      %p162 = scmp.ne.s32.totalorder %s151, %s152
      %p163 = scmp.eq.s32.totalorder %s33, 0
      %p164 = por %p162, %p163
      %p165 = scmp.ne.s32.totalorder %s151, %s152
      %p166 = scmp.eq.s32.totalorder %s34, 1
      %p167 = por %p165, %p166
      %p169 = scmp.ne.s32.totalorder %s152, %s168
      %p170 = scmp.eq.s32.totalorder %s34, 0
      %p171 = por %p169, %p170
      %s172 = ssub.s32 %s28, %s35
      %p173 = scmp.eq.s32.totalorder %s172, 0
      %s175 = sadd.s32 %s174, 1
      %s176 = scalar_select %p173, %s174, %s175
      %p179 = pneg %p173
      %p180 = scmp.eq.s32.totalorder %s28, 1
      %p181 = por %p179, %p180
      %p182 = scmp.ne.s32.totalorder %s174, %s177
      %p183 = scmp.eq.s32.totalorder %s28, 0
      %p184 = por %p182, %p183
      %p185 = scmp.ne.s32.totalorder %s174, %s177
      %p186 = scmp.eq.s32.totalorder %s33, 1
      %p187 = por %p185, %p186
      %p188 = scmp.ne.s32.totalorder %s177, %s178
      %p189 = scmp.eq.s32.totalorder %s33, 0
      %p190 = por %p188, %p189
      %p191 = scmp.ne.s32.totalorder %s177, %s178
      %p192 = scmp.eq.s32.totalorder %s34, 1
      %p193 = por %p191, %p192
      %p195 = scmp.ne.s32.totalorder %s178, %s194
      %p196 = scmp.eq.s32.totalorder %s34, 0
      %p197 = por %p195, %p196
      %s198 = ssub.s32 %s28, %s35
      %p199 = scmp.eq.s32.totalorder %s198, 0
      %s201 = sadd.s32 %s200, 1
      %s202 = scalar_select %p199, %s200, %s201
      %p205 = pneg %p199
      %p206 = scmp.eq.s32.totalorder %s28, 1
      %p207 = por %p205, %p206
      %p208 = scmp.ne.s32.totalorder %s200, %s203
      %p209 = scmp.eq.s32.totalorder %s28, 0
      %p210 = por %p208, %p209
      %p211 = scmp.ne.s32.totalorder %s200, %s203
      %p212 = scmp.eq.s32.totalorder %s33, 1
      %p213 = por %p211, %p212
      %p214 = scmp.ne.s32.totalorder %s203, %s204
      %p215 = scmp.eq.s32.totalorder %s33, 0
      %p216 = por %p214, %p215
      %p217 = scmp.ne.s32.totalorder %s203, %s204
      %p218 = scmp.eq.s32.totalorder %s34, 1
      %p219 = por %p217, %p218
      %p221 = scmp.ne.s32.totalorder %s204, %s220
      %p222 = scmp.eq.s32.totalorder %s34, 0
      %p223 = por %p221, %p222
      %p224 = scmp.le.s32.totalorder 1, %s28
      %p225 = scmp.lt.s32.totalorder %s28, 3
      %p226 = pnand %p224, %p225
      %p227 = pneg %p226
      // Predicated region
      $region9: #{tpu_custom_call.1} parent=5 // pred_check
        _
      $region10: #{tpu_custom_call.1} parent=5 // pred_check_branch
        %229 = sbr.rel (%p226) target = $region12
      $region11: #{tpu_custom_call.1} parent=5 // pred_region
        %s230 = ssub.s32 %s28, 1
        // Predicated region
        $region13: #{tpu_custom_call.1} parent=11 // pred_check
          %p231 = pneg %p75
        $region14: #{tpu_custom_call.1} parent=11 // pred_check_branch
          %233 = sbr.rel (%p231) target = $region16
        $region15: #{tpu_custom_call.1} parent=11 // pred_region
          %s235 = ssub.s32 512, 512
          %236 = vsyncadd [#allocation8], %s235
          %s237 = sshll.u32 [#allocation7], 4
          %s238 = int_to_ptr.vmem [resolvable:$true] %s237
          %243 = dma.hbm_to_vmem [thread:$0]  %s1, 512, %s238, [#allocation8], 128, 128, 8
        $region16: #{tpu_custom_call.1} parent=11 // pred_fallthru
          _
        // Predicated region
        $region17: #{tpu_custom_call.1} parent=11 // pred_check
          %p244 = pneg %p96
        $region18: #{tpu_custom_call.1} parent=11 // pred_check_branch
          %246 = sbr.rel (%p244) target = $region20
        $region19: #{tpu_custom_call.1} parent=11 // pred_region
          %s248 = ssub.s32 16, 16
          %249 = vsyncadd [#allocation8], %s248
          %s251 = sshll.u32 [#allocation9], 4
          %s252 = int_to_ptr.vmem [resolvable:$true] %s251
          %254 = dma.hbm_to_vmem [thread:$0]  %s2, 16, %s252, [#allocation8]
        $region20: #{tpu_custom_call.1} parent=11 // pred_fallthru
          _
        // Predicated region
        $region21: #{tpu_custom_call.1} parent=11 // pred_check
          %p255 = pneg %p117
        $region22: #{tpu_custom_call.1} parent=11 // pred_check_branch
          %257 = sbr.rel (%p255) target = $region24
        $region23: #{tpu_custom_call.1} parent=11 // pred_region
          %s259 = ssub.s32 512, 512
          %260 = vsyncadd [#allocation11], %s259
          %s261 = sshll.u32 [#allocation10], 4
          %s262 = int_to_ptr.vmem [resolvable:$true] %s261
          %267 = dma.hbm_to_vmem [thread:$0]  %s3, 512, %s262, [#allocation11], 128, 128, 8
        $region24: #{tpu_custom_call.1} parent=11 // pred_fallthru
          _
        // Predicated region
        $region25: #{tpu_custom_call.1} parent=11 // pred_check
          %p268 = pneg %p138
        $region26: #{tpu_custom_call.1} parent=11 // pred_check_branch
          %270 = sbr.rel (%p268) target = $region28
        $region27: #{tpu_custom_call.1} parent=11 // pred_region
          %s272 = ssub.s32 16, 16
          %273 = vsyncadd [#allocation11], %s272
          %s275 = sshll.u32 [#allocation12], 4
          %s276 = int_to_ptr.vmem [resolvable:$true] %s275
          %278 = dma.hbm_to_vmem [thread:$0]  %s4, 16, %s276, [#allocation11]
        $region28: #{tpu_custom_call.1} parent=11 // pred_fallthru
          _
      $region12: #{tpu_custom_call.1} parent=5 // pred_fallthru
        _
      %p279 = scmp.lt.s32.totalorder %s28, 2
      // Predicated region
      $region29: #{tpu_custom_call.1} parent=5 // pred_check
        %p280 = pneg %p279
      $region30: #{tpu_custom_call.1} parent=5 // pred_check_branch
        %282 = sbr.rel (%p280) target = $region32
      $region31: #{tpu_custom_call.1} parent=5 // pred_region
        // Predicated region
        $region33: #{tpu_custom_call.1} parent=31 // pred_check
          %p283 = pneg %p48
        $region34: #{tpu_custom_call.1} parent=31 // pred_check_branch
          %285 = sbr.rel (%p283) target = $region36
        $region35: #{tpu_custom_call.1} parent=31 // pred_region
          %s286 = sand.u32 %s38, 1
          %s287 = scalar_lea.sflag [#allocation5], %s286
          %s288 = sand.u32 %s38, 1
          %s289 = smul.addr %s288, 8
          %s290 = scalar_lea.vmem [#allocation4], %s289
          %s292 = ssub.s32 128, 128
          %293 = vsyncadd %s287, %s292
          %s294 = smul.addr %s28, 128
          %s295 = scalar_lea.hbm %s0, %s294
          %s297 = sshll.u32 %s290, 4
          %s298 = int_to_ptr.vmem [resolvable:$true] %s297
          %300 = dma.hbm_to_vmem [thread:$0]  %s295, 128, %s298, %s287
        $region36: #{tpu_custom_call.1} parent=31 // pred_fallthru
          _
        // Predicated region
        $region37: #{tpu_custom_call.1} parent=31 // pred_check
          %p301 = pneg %p158
        $region38: #{tpu_custom_call.1} parent=31 // pred_check_branch
          %303 = sbr.rel (%p301) target = $region40
        $region39: #{tpu_custom_call.1} parent=31 // pred_region
          %s304 = sand.u32 %s148, 1
          %s305 = scalar_lea.sflag [#allocation14], %s304
          %s306 = sand.u32 %s148, 1
          %s307 = smul.addr %s306, 32
          %s308 = scalar_lea.vmem [#allocation13], %s307
          %s310 = ssub.s32 512, 512
          %311 = vsyncadd %s305, %s310
          %s312 = smul.addr %s28, 4
          %s313 = smul.addr %s312, 128
          %s314 = scalar_lea.hbm %s5, %s313
          %s315 = sshll.u32 %s308, 4
          %s316 = int_to_ptr.vmem [resolvable:$true] %s315
          %321 = dma.hbm_to_vmem [thread:$0]  %s314, 512, %s316, %s305, 128, 128, 8
        $region40: #{tpu_custom_call.1} parent=31 // pred_fallthru
          _
      $region32: #{tpu_custom_call.1} parent=5 // pred_fallthru
        _
      %p322 = scmp.le.s32.totalorder 1, %s28
      %p323 = scmp.lt.s32.totalorder %s28, 3
      %p324 = pnand %p322, %p323
      %p325 = pneg %p324
      // Predicated region
      $region41: #{tpu_custom_call.1} parent=5 // pred_check
        _
      $region42: #{tpu_custom_call.1} parent=5 // pred_check_branch
        %327 = sbr.rel (%p324) target = $region44
      $region43: #{tpu_custom_call.1} parent=5 // pred_region
        %s328 = ssub.s32 %s28, 1
        %s329 = sand.u32 %s41, 1
        %s330 = scalar_lea.sflag [#allocation5], %s329
        %s331 = sand.u32 %s41, 1
        %s332 = smul.addr %s331, 8
        %s333 = scalar_lea.vmem [#allocation4], %s332
        // Predicated region
        $region45: #{tpu_custom_call.1} parent=43 // pred_check
          %p334 = pneg %p54
        $region46: #{tpu_custom_call.1} parent=43 // pred_check_branch
          %336 = sbr.rel (%p334) target = $region48
        $region47: #{tpu_custom_call.1} parent=43 // pred_region
          %337 = dma.done %s330, 128
        $region48: #{tpu_custom_call.1} parent=43 // pred_fallthru
          _
        // Predicated region
        $region49: #{tpu_custom_call.1} parent=43 // pred_check
          %p338 = pneg %p75
        $region50: #{tpu_custom_call.1} parent=43 // pred_check_branch
          %340 = sbr.rel (%p338) target = $region52
        $region51: #{tpu_custom_call.1} parent=43 // pred_region
          %341 = dma.done [#allocation8], 512
        $region52: #{tpu_custom_call.1} parent=43 // pred_fallthru
          _
        // Predicated region
        $region53: #{tpu_custom_call.1} parent=43 // pred_check
          %p342 = pneg %p96
        $region54: #{tpu_custom_call.1} parent=43 // pred_check_branch
          %344 = sbr.rel (%p342) target = $region56
        $region55: #{tpu_custom_call.1} parent=43 // pred_region
          %345 = dma.done [#allocation8], 16
        $region56: #{tpu_custom_call.1} parent=43 // pred_fallthru
          _
        // Predicated region
        $region57: #{tpu_custom_call.1} parent=43 // pred_check
          %p346 = pneg %p117
        $region58: #{tpu_custom_call.1} parent=43 // pred_check_branch
          %348 = sbr.rel (%p346) target = $region60
        $region59: #{tpu_custom_call.1} parent=43 // pred_region
          %349 = dma.done [#allocation11], 512
        $region60: #{tpu_custom_call.1} parent=43 // pred_fallthru
          _
        // Predicated region
        $region61: #{tpu_custom_call.1} parent=43 // pred_check
          %p350 = pneg %p138
        $region62: #{tpu_custom_call.1} parent=43 // pred_check_branch
          %352 = sbr.rel (%p350) target = $region64
        $region63: #{tpu_custom_call.1} parent=43 // pred_region
          %353 = dma.done [#allocation11], 16
        $region64: #{tpu_custom_call.1} parent=43 // pred_fallthru
          _
        %s354 = sand.u32 %s151, 1
        %s355 = scalar_lea.sflag [#allocation14], %s354
        %s356 = sand.u32 %s151, 1
        %s357 = smul.addr %s356, 32
        %s358 = scalar_lea.vmem [#allocation13], %s357
        // Predicated region
        $region65: #{tpu_custom_call.1} parent=43 // pred_check
          %p359 = pneg %p164
        $region66: #{tpu_custom_call.1} parent=43 // pred_check_branch
          %361 = sbr.rel (%p359) target = $region68
        $region67: #{tpu_custom_call.1} parent=43 // pred_region
          %362 = dma.done %s355, 512
        $region68: #{tpu_custom_call.1} parent=43 // pred_fallthru
          _
        %s363 = sand.u32 %s41, 1
        %s364 = scalar_lea.sflag [#allocation5], %s363
        %s365 = sand.u32 %s41, 1
        %s366 = smul.addr %s365, 8
        %s367 = scalar_lea.vmem [#allocation4], %s366
        %p368 = pneg %p54
        %p369 = pneg %p51
        %p370 = pneg %p75
        %p371 = pneg %p72
        %p372 = pneg %p96
        %p373 = pneg %p93
        %p374 = pneg %p117
        %p375 = pneg %p114
        %p376 = pneg %p138
        %p377 = pneg %p135
        %s378 = sand.u32 %s151, 1
        %s379 = scalar_lea.sflag [#allocation14], %s378
        %s380 = sand.u32 %s151, 1
        %s381 = smul.addr %s380, 32
        %s382 = scalar_lea.vmem [#allocation13], %s381
        %p383 = pneg %p164
        %p384 = pneg %p161
        %p385 = pneg %p190
        %p386 = pneg %p187
        %s387 = sand.u32 %s177, 1
        %s388 = scalar_lea.sflag [#allocation6], %s387
        %s389 = sand.u32 %s177, 1
        %s390 = smul.addr %s389, 8
        %s391 = scalar_lea.vmem [#allocation15], %s390
        %p392 = pneg %p216
        %p393 = pneg %p213
        %s394 = sand.u32 %s203, 1
        %s395 = scalar_lea.sflag [#allocation17], %s394
        %s396 = sand.u32 %s203, 1
        %s397 = smul.addr %s396, 8
        %s398 = scalar_lea.vmem [#allocation16], %s397
        %v399 = vld [vmem:[%s333] sm:$0xff]
        %v400 = vld [vmem:[#allocation7] sm:$0xff]
        %v401 = vld [vmem:[#allocation7 + $0x8] sm:$0xff]
        %v402 = vld [vmem:[#allocation7 + $0x10] sm:$0xff]
        %v403 = vld [vmem:[#allocation7 + $0x18] sm:$0xff]
        %v404 = vld [vmem:[#allocation9] sm:$0x1]
        %v406 = vlaneseq
        %v407 = vshrl.u32 %v406, 7
        %v408 = vsub.s32 0, %v407
        %v409 = vrot.slane %v404, %v408
        %vm411 = vcmask 261120
        %v413 = vsel %vm411, %v399, 0
        %415 = vmatprep.subr.mxu0 0.0
        %416 = vmatpush1.msra.mxu0 %v400
        %417 = vmatprep.subr.mxu0 0.0
        %418 = vmatpush1.msra.mxu0 %v401
        %419 = vmatprep.subr.mxu0 0.0
        %420 = vmatpush1.msra.mxu0 %v402
        %421 = vmatprep.subr.mxu0 0.0
        %422 = vmatpush1.msra.mxu0 %v403
        %423 = vmatprep.subr.mxu0 0.0
        %424 = vmatpush1.msra.mxu0 0.0
        %425 = vmatprep.subr.mxu0 0.0
        %426 = vmatpush1.msra.mxu0 0.0
        %427 = vmatprep.subr.mxu0 0.0
        %428 = vmatpush1.msra.mxu0 0.0
        %429 = vmatprep.subr.mxu0 0.0
        %430 = vmatpush1.msra.mxu0 0.0
        %431 = vmatprep.subr.mxu0 0.0
        %432 = vmatpush1.msra.mxu0 0.0
        %433 = vmatprep.subr.mxu0 0.0
        %434 = vmatpush1.msra.mxu0 0.0
        %435 = vmatprep.subr.mxu0 0.0
        %436 = vmatpush1.msra.mxu0 0.0
        %437 = vmatprep.subr.mxu0 0.0
        %438 = vmatpush1.msra.mxu0 0.0
        %439 = vmatprep.subr.mxu0 0.0
        %440 = vmatpush1.msra.mxu0 0.0
        %441 = vmatprep.subr.mxu0 0.0
        %442 = vmatpush1.msra.mxu0 0.0
        %443 = vmatprep.subr.mxu0 0.0
        %444 = vmatpush1.msra.mxu0 0.0
        %445 = vmatprep.subr.mxu0 0.0
        %446 = vmatpush1.msra.mxu0 0.0
        %447 = vmatprep.subr.mxu0 0.0
        %448 = vmatpush1.msra.mxu0 0.0
        %449 = vmatprep.subr.mxu0 0.0
        %450 = vmatpush1.msra.mxu0 0.0
        %451 = vmatprep.subr.mxu0 0.0
        %452 = vmatpush1.msra.mxu0 0.0
        %453 = vmatprep.subr.mxu0 0.0
        %454 = vmatpush1.msra.mxu0 0.0
        %455 = vmatprep.subr.mxu0 0.0
        %456 = vmatpush1.msra.mxu0 0.0
        %457 = vmatprep.subr.mxu0 0.0
        %458 = vmatpush1.msra.mxu0 0.0
        %459 = vmatprep.subr.mxu0 0.0
        %460 = vmatpush1.msra.mxu0 0.0
        %461 = vmatprep.subr.mxu0 0.0
        %462 = vmatpush1.msra.mxu0 0.0
        %463 = vmatprep.subr.mxu0 0.0
        %464 = vmatpush1.msra.mxu0 0.0
        %465 = vmatprep.subr.mxu0 0.0
        %466 = vmatpush1.msra.mxu0 0.0
        %467 = vmatprep.subr.mxu0 0.0
        %468 = vmatpush1.msra.mxu0 0.0
        %469 = vmatprep.subr.mxu0 0.0
        %470 = vmatpush1.msra.mxu0 0.0
        %471 = vmatprep.subr.mxu0 0.0
        %472 = vmatpush1.msra.mxu0 0.0
        %473 = vmatprep.subr.mxu0 0.0
        %474 = vmatpush1.msra.mxu0 0.0
        %475 = vmatprep.subr.mxu0 0.0
        %476 = vmatpush1.msra.mxu0 0.0
        %477 = vmatprep.subr.mxu0 0.0
        %478 = vmatpush1.msra.mxu0 0.0
        %479 = vmatprep.mubr.f32.mxu0 0.0
        %480 = vmatmul.mubr.f32.gmra.mrb[0].mxu0 %v413
        %v481 = vpop.f32.mrb[0].mxu0
        %v482 = vadd.f32 %v409, %v481
        %v483 = vpop.f32.mrb[0].mxu0
        %484 = vdwg.mxu0
        %vm485 = vcmask 785408
        %486 = vst.msk [vmem:[#allocation2] sm:$0xff] %vm485, %v482
        %v487 = vld [vmem:[#allocation2] sm:$0xff]
        %489 = vrot.lane.b32.xlu0 %v487, 120
        %v490 = vpop.permute.xlu0 %489
        %491 = vrot.lane.b32.xlu0 %v487, 112
        %v492 = vpop.permute.xlu0 %491
        %493 = vrot.lane.b32.xlu0 %v487, 104
        %v494 = vpop.permute.xlu0 %493
        %v495 = vld [vmem:[%s358] sm:$0xff]
        %v496 = vld [vmem:[%s358 + $0x8] sm:$0xff]
        %v497 = vld [vmem:[%s358 + $0x10] sm:$0xff]
        %v498 = vld [vmem:[%s358 + $0x18] sm:$0xff]
        %499 = vrot.lane.b32.xlu0 %v487, 96
        %v500 = vpop.permute.xlu0 %499
        %vm501 = vcmask 64512
        %v502 = vsel %vm501, %v487, 0
        %v504 = vsel %vm501, %v500, 0
        %506 = vmatprep.subr.mxu0 0.0
        %507 = vmatpush1.xpose.msra.mxu0 %v504
        %508 = vmatprep.subr.mxu0 0.0
        %509 = vmatpush1.xpose.msra.mxu0 0.0
        %510 = vmatprep.subr.mxu0 0.0
        %511 = vmatpush1.xpose.msra.mxu0 0.0
        %512 = vmatprep.subr.mxu0 0.0
        %513 = vmatpush1.xpose.msra.mxu0 0.0
        %514 = vmatprep.subr.mxu0 0.0
        %515 = vmatpush1.xpose.msra.mxu0 0.0
        %516 = vmatprep.subr.mxu0 0.0
        %517 = vmatpush1.xpose.msra.mxu0 0.0
        %518 = vmatprep.subr.mxu0 0.0
        %519 = vmatpush1.xpose.msra.mxu0 0.0
        %520 = vmatprep.subr.mxu0 0.0
        %521 = vmatpush1.xpose.msra.mxu0 0.0
        %522 = vmatprep.subr.mxu0 0.0
        %523 = vmatpush1.xpose.msra.mxu0 0.0
        %524 = vmatprep.subr.mxu0 0.0
        %525 = vmatpush1.xpose.msra.mxu0 0.0
        %526 = vmatprep.subr.mxu0 0.0
        %527 = vmatpush1.xpose.msra.mxu0 0.0
        %528 = vmatprep.subr.mxu0 0.0
        %529 = vmatpush1.xpose.msra.mxu0 0.0
        %530 = vmatprep.subr.mxu0 0.0
        %531 = vmatpush1.xpose.msra.mxu0 0.0
        %532 = vmatprep.subr.mxu0 0.0
        %533 = vmatpush1.xpose.msra.mxu0 0.0
        %534 = vmatprep.subr.mxu0 0.0
        %535 = vmatpush1.xpose.msra.mxu0 0.0
        %536 = vmatprep.subr.mxu0 0.0
        %537 = vmatpush1.xpose.msra.mxu0 0.0
        %538 = vmatprep.subr.mxu0 0.0
        %539 = vmatpush1.xpose.msra.mxu0 0.0
        %540 = vmatprep.subr.mxu0 0.0
        %541 = vmatpush1.xpose.msra.mxu0 0.0
        %542 = vmatprep.subr.mxu0 0.0
        %543 = vmatpush1.xpose.msra.mxu0 0.0
        %544 = vmatprep.subr.mxu0 0.0
        %545 = vmatpush1.xpose.msra.mxu0 0.0
        %546 = vmatprep.subr.mxu0 0.0
        %547 = vmatpush1.xpose.msra.mxu0 0.0
        %548 = vmatprep.subr.mxu0 0.0
        %549 = vmatpush1.xpose.msra.mxu0 0.0
        %550 = vmatprep.subr.mxu0 0.0
        %551 = vmatpush1.xpose.msra.mxu0 0.0
        %552 = vmatprep.subr.mxu0 0.0
        %553 = vmatpush1.xpose.msra.mxu0 0.0
        %554 = vmatprep.subr.mxu0 0.0
        %555 = vmatpush1.xpose.msra.mxu0 0.0
        %556 = vmatprep.subr.mxu0 0.0
        %557 = vmatpush1.xpose.msra.mxu0 0.0
        %558 = vmatprep.subr.mxu0 0.0
        %559 = vmatpush1.xpose.msra.mxu0 0.0
        %560 = vmatprep.subr.mxu0 0.0
        %561 = vmatpush1.xpose.msra.mxu0 0.0
        %562 = vmatprep.subr.mxu0 0.0
        %563 = vmatpush1.xpose.msra.mxu0 0.0
        %564 = vmatprep.subr.mxu0 0.0
        %565 = vmatpush1.xpose.msra.mxu0 0.0
        %566 = vmatprep.subr.mxu0 0.0
        %567 = vmatpush1.xpose.msra.mxu0 0.0
        %568 = vmatprep.subr.mxu0 0.0
        %569 = vmatpush1.xpose.msra.mxu0 0.0
        %570 = vmatprep.mubr.f32.mxu0 0.0
        %571 = vmatmul.mubr.f32.gmra.mrb[0].mxu0 %v502
        %v572 = vpop.f32.mrb[0].mxu0
        %v573 = vadd.f32 %v495, %v572
        %v574 = vpop.f32.mrb[0].mxu0
        %575 = vdwg.mxu0
        %576 = vrot.lane.b32.xlu0 %v490, 96
        %v577 = vpop.permute.xlu0 %576
        %v578 = vsel %vm501, %v490, 0
        %v580 = vsel %vm501, %v577, 0
        %582 = vmatprep.subr.mxu0 0.0
        %583 = vmatpush1.xpose.msra.mxu0 %v580
        %584 = vmatprep.subr.mxu0 0.0
        %585 = vmatpush1.xpose.msra.mxu0 0.0
        %586 = vmatprep.subr.mxu0 0.0
        %587 = vmatpush1.xpose.msra.mxu0 0.0
        %588 = vmatprep.subr.mxu0 0.0
        %589 = vmatpush1.xpose.msra.mxu0 0.0
        %590 = vmatprep.subr.mxu0 0.0
        %591 = vmatpush1.xpose.msra.mxu0 0.0
        %592 = vmatprep.subr.mxu0 0.0
        %593 = vmatpush1.xpose.msra.mxu0 0.0
        %594 = vmatprep.subr.mxu0 0.0
        %595 = vmatpush1.xpose.msra.mxu0 0.0
        %596 = vmatprep.subr.mxu0 0.0
        %597 = vmatpush1.xpose.msra.mxu0 0.0
        %598 = vmatprep.subr.mxu0 0.0
        %599 = vmatpush1.xpose.msra.mxu0 0.0
        %600 = vmatprep.subr.mxu0 0.0
        %601 = vmatpush1.xpose.msra.mxu0 0.0
        %602 = vmatprep.subr.mxu0 0.0
        %603 = vmatpush1.xpose.msra.mxu0 0.0
        %604 = vmatprep.subr.mxu0 0.0
        %605 = vmatpush1.xpose.msra.mxu0 0.0
        %606 = vmatprep.subr.mxu0 0.0
        %607 = vmatpush1.xpose.msra.mxu0 0.0
        %608 = vmatprep.subr.mxu0 0.0
        %609 = vmatpush1.xpose.msra.mxu0 0.0
        %610 = vmatprep.subr.mxu0 0.0
        %611 = vmatpush1.xpose.msra.mxu0 0.0
        %612 = vmatprep.subr.mxu0 0.0
        %613 = vmatpush1.xpose.msra.mxu0 0.0
        %614 = vmatprep.subr.mxu0 0.0
        %615 = vmatpush1.xpose.msra.mxu0 0.0
        %616 = vmatprep.subr.mxu0 0.0
        %617 = vmatpush1.xpose.msra.mxu0 0.0
        %618 = vmatprep.subr.mxu0 0.0
        %619 = vmatpush1.xpose.msra.mxu0 0.0
        %620 = vmatprep.subr.mxu0 0.0
        %621 = vmatpush1.xpose.msra.mxu0 0.0
        %622 = vmatprep.subr.mxu0 0.0
        %623 = vmatpush1.xpose.msra.mxu0 0.0
        %624 = vmatprep.subr.mxu0 0.0
        %625 = vmatpush1.xpose.msra.mxu0 0.0
        %626 = vmatprep.subr.mxu0 0.0
        %627 = vmatpush1.xpose.msra.mxu0 0.0
        %628 = vmatprep.subr.mxu0 0.0
        %629 = vmatpush1.xpose.msra.mxu0 0.0
        %630 = vmatprep.subr.mxu0 0.0
        %631 = vmatpush1.xpose.msra.mxu0 0.0
        %632 = vmatprep.subr.mxu0 0.0
        %633 = vmatpush1.xpose.msra.mxu0 0.0
        %634 = vmatprep.subr.mxu0 0.0
        %635 = vmatpush1.xpose.msra.mxu0 0.0
        %636 = vmatprep.subr.mxu0 0.0
        %637 = vmatpush1.xpose.msra.mxu0 0.0
        %638 = vmatprep.subr.mxu0 0.0
        %639 = vmatpush1.xpose.msra.mxu0 0.0
        %640 = vmatprep.subr.mxu0 0.0
        %641 = vmatpush1.xpose.msra.mxu0 0.0
        %642 = vmatprep.subr.mxu0 0.0
        %643 = vmatpush1.xpose.msra.mxu0 0.0
        %644 = vmatprep.subr.mxu0 0.0
        %645 = vmatpush1.xpose.msra.mxu0 0.0
        %646 = vmatprep.mubr.f32.mxu0 0.0
        %647 = vmatmul.mubr.f32.gmra.mrb[0].mxu0 %v578
        %v648 = vpop.f32.mrb[0].mxu0
        %v649 = vadd.f32 %v496, %v648
        %v650 = vpop.f32.mrb[0].mxu0
        %651 = vdwg.mxu0
        %652 = vrot.lane.b32.xlu0 %v492, 96
        %v653 = vpop.permute.xlu0 %652
        %v654 = vsel %vm501, %v492, 0
        %v656 = vsel %vm501, %v653, 0
        %658 = vmatprep.subr.mxu0 0.0
        %659 = vmatpush1.xpose.msra.mxu0 %v656
        %660 = vmatprep.subr.mxu0 0.0
        %661 = vmatpush1.xpose.msra.mxu0 0.0
        %662 = vmatprep.subr.mxu0 0.0
        %663 = vmatpush1.xpose.msra.mxu0 0.0
        %664 = vmatprep.subr.mxu0 0.0
        %665 = vmatpush1.xpose.msra.mxu0 0.0
        %666 = vmatprep.subr.mxu0 0.0
        %667 = vmatpush1.xpose.msra.mxu0 0.0
        %668 = vmatprep.subr.mxu0 0.0
        %669 = vmatpush1.xpose.msra.mxu0 0.0
        %670 = vmatprep.subr.mxu0 0.0
        %671 = vmatpush1.xpose.msra.mxu0 0.0
        %672 = vmatprep.subr.mxu0 0.0
        %673 = vmatpush1.xpose.msra.mxu0 0.0
        %674 = vmatprep.subr.mxu0 0.0
        %675 = vmatpush1.xpose.msra.mxu0 0.0
        %676 = vmatprep.subr.mxu0 0.0
        %677 = vmatpush1.xpose.msra.mxu0 0.0
        %678 = vmatprep.subr.mxu0 0.0
        %679 = vmatpush1.xpose.msra.mxu0 0.0
        %680 = vmatprep.subr.mxu0 0.0
        %681 = vmatpush1.xpose.msra.mxu0 0.0
        %682 = vmatprep.subr.mxu0 0.0
        %683 = vmatpush1.xpose.msra.mxu0 0.0
        %684 = vmatprep.subr.mxu0 0.0
        %685 = vmatpush1.xpose.msra.mxu0 0.0
        %686 = vmatprep.subr.mxu0 0.0
        %687 = vmatpush1.xpose.msra.mxu0 0.0
        %688 = vmatprep.subr.mxu0 0.0
        %689 = vmatpush1.xpose.msra.mxu0 0.0
        %690 = vmatprep.subr.mxu0 0.0
        %691 = vmatpush1.xpose.msra.mxu0 0.0
        %692 = vmatprep.subr.mxu0 0.0
        %693 = vmatpush1.xpose.msra.mxu0 0.0
        %694 = vmatprep.subr.mxu0 0.0
        %695 = vmatpush1.xpose.msra.mxu0 0.0
        %696 = vmatprep.subr.mxu0 0.0
        %697 = vmatpush1.xpose.msra.mxu0 0.0
        %698 = vmatprep.subr.mxu0 0.0
        %699 = vmatpush1.xpose.msra.mxu0 0.0
        %700 = vmatprep.subr.mxu0 0.0
        %701 = vmatpush1.xpose.msra.mxu0 0.0
        %702 = vmatprep.subr.mxu0 0.0
        %703 = vmatpush1.xpose.msra.mxu0 0.0
        %704 = vmatprep.subr.mxu0 0.0
        %705 = vmatpush1.xpose.msra.mxu0 0.0
        %706 = vmatprep.subr.mxu0 0.0
        %707 = vmatpush1.xpose.msra.mxu0 0.0
        %708 = vmatprep.subr.mxu0 0.0
        %709 = vmatpush1.xpose.msra.mxu0 0.0
        %710 = vmatprep.subr.mxu0 0.0
        %711 = vmatpush1.xpose.msra.mxu0 0.0
        %712 = vmatprep.subr.mxu0 0.0
        %713 = vmatpush1.xpose.msra.mxu0 0.0
        %714 = vmatprep.subr.mxu0 0.0
        %715 = vmatpush1.xpose.msra.mxu0 0.0
        %716 = vmatprep.subr.mxu0 0.0
        %717 = vmatpush1.xpose.msra.mxu0 0.0
        %718 = vmatprep.subr.mxu0 0.0
        %719 = vmatpush1.xpose.msra.mxu0 0.0
        %720 = vmatprep.subr.mxu0 0.0
        %721 = vmatpush1.xpose.msra.mxu0 0.0
        %722 = vmatprep.mubr.f32.mxu0 0.0
        %723 = vmatmul.mubr.f32.gmra.mrb[0].mxu0 %v654
        %v724 = vpop.f32.mrb[0].mxu0
        %v725 = vadd.f32 %v497, %v724
        %v726 = vpop.f32.mrb[0].mxu0
        %727 = vdwg.mxu0
        %728 = vrot.lane.b32.xlu0 %v494, 96
        %v729 = vpop.permute.xlu0 %728
        %v730 = vsel %vm501, %v494, 0
        %v732 = vsel %vm501, %v729, 0
        %734 = vmatprep.subr.mxu0 0.0
        %735 = vmatpush1.xpose.msra.mxu0 %v732
        %736 = vmatprep.subr.mxu0 0.0
        %737 = vmatpush1.xpose.msra.mxu0 0.0
        %738 = vmatprep.subr.mxu0 0.0
        %739 = vmatpush1.xpose.msra.mxu0 0.0
        %740 = vmatprep.subr.mxu0 0.0
        %741 = vmatpush1.xpose.msra.mxu0 0.0
        %742 = vmatprep.subr.mxu0 0.0
        %743 = vmatpush1.xpose.msra.mxu0 0.0
        %744 = vmatprep.subr.mxu0 0.0
        %745 = vmatpush1.xpose.msra.mxu0 0.0
        %746 = vmatprep.subr.mxu0 0.0
        %747 = vmatpush1.xpose.msra.mxu0 0.0
        %748 = vmatprep.subr.mxu0 0.0
        %749 = vmatpush1.xpose.msra.mxu0 0.0
        %750 = vmatprep.subr.mxu0 0.0
        %751 = vmatpush1.xpose.msra.mxu0 0.0
        %752 = vmatprep.subr.mxu0 0.0
        %753 = vmatpush1.xpose.msra.mxu0 0.0
        %754 = vmatprep.subr.mxu0 0.0
        %755 = vmatpush1.xpose.msra.mxu0 0.0
        %756 = vmatprep.subr.mxu0 0.0
        %757 = vmatpush1.xpose.msra.mxu0 0.0
        %758 = vmatprep.subr.mxu0 0.0
        %759 = vmatpush1.xpose.msra.mxu0 0.0
        %760 = vmatprep.subr.mxu0 0.0
        %761 = vmatpush1.xpose.msra.mxu0 0.0
        %762 = vmatprep.subr.mxu0 0.0
        %763 = vmatpush1.xpose.msra.mxu0 0.0
        %764 = vmatprep.subr.mxu0 0.0
        %765 = vmatpush1.xpose.msra.mxu0 0.0
        %766 = vmatprep.subr.mxu0 0.0
        %767 = vmatpush1.xpose.msra.mxu0 0.0
        %768 = vmatprep.subr.mxu0 0.0
        %769 = vmatpush1.xpose.msra.mxu0 0.0
        %770 = vmatprep.subr.mxu0 0.0
        %771 = vmatpush1.xpose.msra.mxu0 0.0
        %772 = vmatprep.subr.mxu0 0.0
        %773 = vmatpush1.xpose.msra.mxu0 0.0
        %774 = vmatprep.subr.mxu0 0.0
        %775 = vmatpush1.xpose.msra.mxu0 0.0
        %776 = vmatprep.subr.mxu0 0.0
        %777 = vmatpush1.xpose.msra.mxu0 0.0
        %778 = vmatprep.subr.mxu0 0.0
        %779 = vmatpush1.xpose.msra.mxu0 0.0
        %780 = vmatprep.subr.mxu0 0.0
        %781 = vmatpush1.xpose.msra.mxu0 0.0
        %782 = vmatprep.subr.mxu0 0.0
        %783 = vmatpush1.xpose.msra.mxu0 0.0
        %784 = vmatprep.subr.mxu0 0.0
        %785 = vmatpush1.xpose.msra.mxu0 0.0
        %786 = vmatprep.subr.mxu0 0.0
        %787 = vmatpush1.xpose.msra.mxu0 0.0
        %788 = vmatprep.subr.mxu0 0.0
        %789 = vmatpush1.xpose.msra.mxu0 0.0
        %790 = vmatprep.subr.mxu0 0.0
        %791 = vmatpush1.xpose.msra.mxu0 0.0
        %792 = vmatprep.subr.mxu0 0.0
        %793 = vmatpush1.xpose.msra.mxu0 0.0
        %794 = vmatprep.subr.mxu0 0.0
        %795 = vmatpush1.xpose.msra.mxu0 0.0
        %796 = vmatprep.subr.mxu0 0.0
        %797 = vmatpush1.xpose.msra.mxu0 0.0
        %798 = vmatprep.mubr.f32.mxu0 0.0
        %799 = vmatmul.mubr.f32.gmra.mrb[0].mxu0 %v730
        %v800 = vpop.f32.mrb[0].mxu0
        %v801 = vadd.f32 %v498, %v800
        %v802 = vpop.f32.mrb[0].mxu0
        %803 = vdwg.mxu0
        %v804 = vsel %vm501, %v573, -inf
        %805 = vmax.xlane.f32.xlu0 %v804
        %v806 = vpop.xlane.xlu0 %805
        %v807 = vsel %vm501, %v649, -inf
        %808 = vmax.xlane.f32.xlu0 %v807
        %v809 = vpop.xlane.xlu0 %808
        %v810 = vsel %vm501, %v725, -inf
        %811 = vmax.xlane.f32.xlu0 %v810
        %v812 = vpop.xlane.xlu0 %811
        %v813 = vsel %vm501, %v801, -inf
        %814 = vmax.xlane.f32.xlu0 %v813
        %v815 = vpop.xlane.xlu0 %814
        %v816 = vsub.f32 %v573, %v806
        %v817 = vsub.f32 %v649, %v809
        %v818 = vsub.f32 %v725, %v812
        %v819 = vsub.f32 %v801, %v815
        %v820 = vmul.f32 %v816, 1.442695
        %v821 = vpow.pop %v820
        %v822 = vmul.f32 %v817, 1.442695
        %v823 = vpow.pop %v822
        %v824 = vmul.f32 %v818, 1.442695
        %v825 = vpow.pop %v824
        %v826 = vmul.f32 %v819, 1.442695
        %v827 = vpow.pop %v826
        %v828 = vsel %vm501, %v821, 0.0
        %829 = vadd.xlane.f32.xlu0 %v828
        %v830 = vpop.xlane.xlu0 %829
        %v831 = vsel %vm501, %v823, 0.0
        %832 = vadd.xlane.f32.xlu0 %v831
        %v833 = vpop.xlane.xlu0 %832
        %v834 = vsel %vm501, %v825, 0.0
        %835 = vadd.xlane.f32.xlu0 %v834
        %v836 = vpop.xlane.xlu0 %835
        %v837 = vsel %vm501, %v827, 0.0
        %838 = vadd.xlane.f32.xlu0 %v837
        %v839 = vpop.xlane.xlu0 %838
        %v840 = vrcp.pop %v830
        %v841 = vmul.f32 1.0, %v840
        %v842 = vrcp.pop %v833
        %v843 = vmul.f32 1.0, %v842
        %v844 = vrcp.pop %v836
        %v845 = vmul.f32 1.0, %v844
        %v846 = vrcp.pop %v839
        %v847 = vmul.f32 1.0, %v846
        %v848 = vmul.f32 %v821, %v841
        %v849 = vmul.f32 %v823, %v843
        %v850 = vmul.f32 %v825, %v845
        %v851 = vmul.f32 %v827, %v847
        %v852 = vsel %vm501, %v848, 0.0
        %v853 = vsel %vm501, %v849, 0.0
        %v854 = vadd.f32 %v852, %v853
        %v855 = vsel %vm501, %v850, 0.0
        %v856 = vadd.f32 %v854, %v855
        %v857 = vsel %vm501, %v851, 0.0
        %v858 = vadd.f32 %v856, %v857
        %v859 = vrcp.pop 4.0
        %v860 = vmul.f32 %v858, %v859
        %861 = vst.msk [vmem:[%s398] sm:$0xff] %vm501, %v860
        %862 = vrot.lane.b32.xlu0 %v487, 64
        %v863 = vpop.permute.xlu0 %862
        %v866 = vsel %vm501, %v848, 0
        %868 = vmatprep.subr.mxu0 0.0
        %869 = vmatpush1.msra.mxu0 %v863
        %870 = vmatprep.subr.mxu0 0.0
        %871 = vmatpush1.msra.mxu0 0.0
        %872 = vmatprep.subr.mxu0 0.0
        %873 = vmatpush1.msra.mxu0 0.0
        %874 = vmatprep.subr.mxu0 0.0
        %875 = vmatpush1.msra.mxu0 0.0
        %876 = vmatprep.subr.mxu0 0.0
        %877 = vmatpush1.msra.mxu0 0.0
        %878 = vmatprep.subr.mxu0 0.0
        %879 = vmatpush1.msra.mxu0 0.0
        %880 = vmatprep.subr.mxu0 0.0
        %881 = vmatpush1.msra.mxu0 0.0
        %882 = vmatprep.subr.mxu0 0.0
        %883 = vmatpush1.msra.mxu0 0.0
        %884 = vmatprep.subr.mxu0 0.0
        %885 = vmatpush1.msra.mxu0 0.0
        %886 = vmatprep.subr.mxu0 0.0
        %887 = vmatpush1.msra.mxu0 0.0
        %888 = vmatprep.subr.mxu0 0.0
        %889 = vmatpush1.msra.mxu0 0.0
        %890 = vmatprep.subr.mxu0 0.0
        %891 = vmatpush1.msra.mxu0 0.0
        %892 = vmatprep.subr.mxu0 0.0
        %893 = vmatpush1.msra.mxu0 0.0
        %894 = vmatprep.subr.mxu0 0.0
        %895 = vmatpush1.msra.mxu0 0.0
        %896 = vmatprep.subr.mxu0 0.0
        %897 = vmatpush1.msra.mxu0 0.0
        %898 = vmatprep.subr.mxu0 0.0
        %899 = vmatpush1.msra.mxu0 0.0
        %900 = vmatprep.subr.mxu0 0.0
        %901 = vmatpush1.msra.mxu0 0.0
        %902 = vmatprep.subr.mxu0 0.0
        %903 = vmatpush1.msra.mxu0 0.0
        %904 = vmatprep.subr.mxu0 0.0
        %905 = vmatpush1.msra.mxu0 0.0
        %906 = vmatprep.subr.mxu0 0.0
        %907 = vmatpush1.msra.mxu0 0.0
        %908 = vmatprep.subr.mxu0 0.0
        %909 = vmatpush1.msra.mxu0 0.0
        %910 = vmatprep.subr.mxu0 0.0
        %911 = vmatpush1.msra.mxu0 0.0
        %912 = vmatprep.subr.mxu0 0.0
        %913 = vmatpush1.msra.mxu0 0.0
        %914 = vmatprep.subr.mxu0 0.0
        %915 = vmatpush1.msra.mxu0 0.0
        %916 = vmatprep.subr.mxu0 0.0
        %917 = vmatpush1.msra.mxu0 0.0
        %918 = vmatprep.subr.mxu0 0.0
        %919 = vmatpush1.msra.mxu0 0.0
        %920 = vmatprep.subr.mxu0 0.0
        %921 = vmatpush1.msra.mxu0 0.0
        %922 = vmatprep.subr.mxu0 0.0
        %923 = vmatpush1.msra.mxu0 0.0
        %924 = vmatprep.subr.mxu0 0.0
        %925 = vmatpush1.msra.mxu0 0.0
        %926 = vmatprep.subr.mxu0 0.0
        %927 = vmatpush1.msra.mxu0 0.0
        %928 = vmatprep.subr.mxu0 0.0
        %929 = vmatpush1.msra.mxu0 0.0
        %930 = vmatprep.subr.mxu0 0.0
        %931 = vmatpush1.msra.mxu0 0.0
        %932 = vmatprep.mubr.f32.mxu0 0.0
        %933 = vmatmul.mubr.f32.gmra.mrb[0].mxu0 %v866
        %v934 = vpop.f32.mrb[0].mxu0
        %v935 = vadd.f32 0.0, %v934
        %v936 = vpop.f32.mrb[0].mxu0
        %937 = vdwg.mxu0
        %938 = vrot.lane.b32.xlu0 %v490, 64
        %v939 = vpop.permute.xlu0 %938
        %v942 = vsel %vm501, %v849, 0
        %944 = vmatprep.subr.mxu0 0.0
        %945 = vmatpush1.msra.mxu0 %v939
        %946 = vmatprep.subr.mxu0 0.0
        %947 = vmatpush1.msra.mxu0 0.0
        %948 = vmatprep.subr.mxu0 0.0
        %949 = vmatpush1.msra.mxu0 0.0
        %950 = vmatprep.subr.mxu0 0.0
        %951 = vmatpush1.msra.mxu0 0.0
        %952 = vmatprep.subr.mxu0 0.0
        %953 = vmatpush1.msra.mxu0 0.0
        %954 = vmatprep.subr.mxu0 0.0
        %955 = vmatpush1.msra.mxu0 0.0
        %956 = vmatprep.subr.mxu0 0.0
        %957 = vmatpush1.msra.mxu0 0.0
        %958 = vmatprep.subr.mxu0 0.0
        %959 = vmatpush1.msra.mxu0 0.0
        %960 = vmatprep.subr.mxu0 0.0
        %961 = vmatpush1.msra.mxu0 0.0
        %962 = vmatprep.subr.mxu0 0.0
        %963 = vmatpush1.msra.mxu0 0.0
        %964 = vmatprep.subr.mxu0 0.0
        %965 = vmatpush1.msra.mxu0 0.0
        %966 = vmatprep.subr.mxu0 0.0
        %967 = vmatpush1.msra.mxu0 0.0
        %968 = vmatprep.subr.mxu0 0.0
        %969 = vmatpush1.msra.mxu0 0.0
        %970 = vmatprep.subr.mxu0 0.0
        %971 = vmatpush1.msra.mxu0 0.0
        %972 = vmatprep.subr.mxu0 0.0
        %973 = vmatpush1.msra.mxu0 0.0
        %974 = vmatprep.subr.mxu0 0.0
        %975 = vmatpush1.msra.mxu0 0.0
        %976 = vmatprep.subr.mxu0 0.0
        %977 = vmatpush1.msra.mxu0 0.0
        %978 = vmatprep.subr.mxu0 0.0
        %979 = vmatpush1.msra.mxu0 0.0
        %980 = vmatprep.subr.mxu0 0.0
        %981 = vmatpush1.msra.mxu0 0.0
        %982 = vmatprep.subr.mxu0 0.0
        %983 = vmatpush1.msra.mxu0 0.0
        %984 = vmatprep.subr.mxu0 0.0
        %985 = vmatpush1.msra.mxu0 0.0
        %986 = vmatprep.subr.mxu0 0.0
        %987 = vmatpush1.msra.mxu0 0.0
        %988 = vmatprep.subr.mxu0 0.0
        %989 = vmatpush1.msra.mxu0 0.0
        %990 = vmatprep.subr.mxu0 0.0
        %991 = vmatpush1.msra.mxu0 0.0
        %992 = vmatprep.subr.mxu0 0.0
        %993 = vmatpush1.msra.mxu0 0.0
        %994 = vmatprep.subr.mxu0 0.0
        %995 = vmatpush1.msra.mxu0 0.0
        %996 = vmatprep.subr.mxu0 0.0
        %997 = vmatpush1.msra.mxu0 0.0
        %998 = vmatprep.subr.mxu0 0.0
        %999 = vmatpush1.msra.mxu0 0.0
        %1000 = vmatprep.subr.mxu0 0.0
        %1001 = vmatpush1.msra.mxu0 0.0
        %1002 = vmatprep.subr.mxu0 0.0
        %1003 = vmatpush1.msra.mxu0 0.0
        %1004 = vmatprep.subr.mxu0 0.0
        %1005 = vmatpush1.msra.mxu0 0.0
        %1006 = vmatprep.subr.mxu0 0.0
        %1007 = vmatpush1.msra.mxu0 0.0
        %1008 = vmatprep.mubr.f32.mxu0 0.0
        %1009 = vmatmul.mubr.f32.gmra.mrb[0].mxu0 %v942
        %v1010 = vpop.f32.mrb[0].mxu0
        %v1011 = vadd.f32 0.0, %v1010
        %v1012 = vpop.f32.mrb[0].mxu0
        %1013 = vdwg.mxu0
        %1014 = vrot.lane.b32.xlu0 %v492, 64
        %v1015 = vpop.permute.xlu0 %1014
        %v1018 = vsel %vm501, %v850, 0
        %1020 = vmatprep.subr.mxu0 0.0
        %1021 = vmatpush1.msra.mxu0 %v1015
        %1022 = vmatprep.subr.mxu0 0.0
        %1023 = vmatpush1.msra.mxu0 0.0
        %1024 = vmatprep.subr.mxu0 0.0
        %1025 = vmatpush1.msra.mxu0 0.0
        %1026 = vmatprep.subr.mxu0 0.0
        %1027 = vmatpush1.msra.mxu0 0.0
        %1028 = vmatprep.subr.mxu0 0.0
        %1029 = vmatpush1.msra.mxu0 0.0
        %1030 = vmatprep.subr.mxu0 0.0
        %1031 = vmatpush1.msra.mxu0 0.0
        %1032 = vmatprep.subr.mxu0 0.0
        %1033 = vmatpush1.msra.mxu0 0.0
        %1034 = vmatprep.subr.mxu0 0.0
        %1035 = vmatpush1.msra.mxu0 0.0
        %1036 = vmatprep.subr.mxu0 0.0
        %1037 = vmatpush1.msra.mxu0 0.0
        %1038 = vmatprep.subr.mxu0 0.0
        %1039 = vmatpush1.msra.mxu0 0.0
        %1040 = vmatprep.subr.mxu0 0.0
        %1041 = vmatpush1.msra.mxu0 0.0
        %1042 = vmatprep.subr.mxu0 0.0
        %1043 = vmatpush1.msra.mxu0 0.0
        %1044 = vmatprep.subr.mxu0 0.0
        %1045 = vmatpush1.msra.mxu0 0.0
        %1046 = vmatprep.subr.mxu0 0.0
        %1047 = vmatpush1.msra.mxu0 0.0
        %1048 = vmatprep.subr.mxu0 0.0
        %1049 = vmatpush1.msra.mxu0 0.0
        %1050 = vmatprep.subr.mxu0 0.0
        %1051 = vmatpush1.msra.mxu0 0.0
        %1052 = vmatprep.subr.mxu0 0.0
        %1053 = vmatpush1.msra.mxu0 0.0
        %1054 = vmatprep.subr.mxu0 0.0
        %1055 = vmatpush1.msra.mxu0 0.0
        %1056 = vmatprep.subr.mxu0 0.0
        %1057 = vmatpush1.msra.mxu0 0.0
        %1058 = vmatprep.subr.mxu0 0.0
        %1059 = vmatpush1.msra.mxu0 0.0
        %1060 = vmatprep.subr.mxu0 0.0
        %1061 = vmatpush1.msra.mxu0 0.0
        %1062 = vmatprep.subr.mxu0 0.0
        %1063 = vmatpush1.msra.mxu0 0.0
        %1064 = vmatprep.subr.mxu0 0.0
        %1065 = vmatpush1.msra.mxu0 0.0
        %1066 = vmatprep.subr.mxu0 0.0
        %1067 = vmatpush1.msra.mxu0 0.0
        %1068 = vmatprep.subr.mxu0 0.0
        %1069 = vmatpush1.msra.mxu0 0.0
        %1070 = vmatprep.subr.mxu0 0.0
        %1071 = vmatpush1.msra.mxu0 0.0
        %1072 = vmatprep.subr.mxu0 0.0
        %1073 = vmatpush1.msra.mxu0 0.0
        %1074 = vmatprep.subr.mxu0 0.0
        %1075 = vmatpush1.msra.mxu0 0.0
        %1076 = vmatprep.subr.mxu0 0.0
        %1077 = vmatpush1.msra.mxu0 0.0
        %1078 = vmatprep.subr.mxu0 0.0
        %1079 = vmatpush1.msra.mxu0 0.0
        %1080 = vmatprep.subr.mxu0 0.0
        %1081 = vmatpush1.msra.mxu0 0.0
        %1082 = vmatprep.subr.mxu0 0.0
        %1083 = vmatpush1.msra.mxu0 0.0
        %1084 = vmatprep.mubr.f32.mxu0 0.0
        %1085 = vmatmul.mubr.f32.gmra.mrb[0].mxu0 %v1018
        %v1086 = vpop.f32.mrb[0].mxu0
        %v1087 = vadd.f32 0.0, %v1086
        %v1088 = vpop.f32.mrb[0].mxu0
        %1089 = vdwg.mxu0
        %1090 = vrot.lane.b32.xlu0 %v494, 64
        %v1091 = vpop.permute.xlu0 %1090
        %v1094 = vsel %vm501, %v851, 0
        %1096 = vmatprep.subr.mxu0 0.0
        %1097 = vmatpush1.msra.mxu0 %v1091
        %1098 = vmatprep.subr.mxu0 0.0
        %1099 = vmatpush1.msra.mxu0 0.0
        %1100 = vmatprep.subr.mxu0 0.0
        %1101 = vmatpush1.msra.mxu0 0.0
        %1102 = vmatprep.subr.mxu0 0.0
        %1103 = vmatpush1.msra.mxu0 0.0
        %1104 = vmatprep.subr.mxu0 0.0
        %1105 = vmatpush1.msra.mxu0 0.0
        %1106 = vmatprep.subr.mxu0 0.0
        %1107 = vmatpush1.msra.mxu0 0.0
        %1108 = vmatprep.subr.mxu0 0.0
        %1109 = vmatpush1.msra.mxu0 0.0
        %1110 = vmatprep.subr.mxu0 0.0
        %1111 = vmatpush1.msra.mxu0 0.0
        %1112 = vmatprep.subr.mxu0 0.0
        %1113 = vmatpush1.msra.mxu0 0.0
        %1114 = vmatprep.subr.mxu0 0.0
        %1115 = vmatpush1.msra.mxu0 0.0
        %1116 = vmatprep.subr.mxu0 0.0
        %1117 = vmatpush1.msra.mxu0 0.0
        %1118 = vmatprep.subr.mxu0 0.0
        %1119 = vmatpush1.msra.mxu0 0.0
        %1120 = vmatprep.subr.mxu0 0.0
        %1121 = vmatpush1.msra.mxu0 0.0
        %1122 = vmatprep.subr.mxu0 0.0
        %1123 = vmatpush1.msra.mxu0 0.0
        %1124 = vmatprep.subr.mxu0 0.0
        %1125 = vmatpush1.msra.mxu0 0.0
        %1126 = vmatprep.subr.mxu0 0.0
        %1127 = vmatpush1.msra.mxu0 0.0
        %1128 = vmatprep.subr.mxu0 0.0
        %1129 = vmatpush1.msra.mxu0 0.0
        %1130 = vmatprep.subr.mxu0 0.0
        %1131 = vmatpush1.msra.mxu0 0.0
        %1132 = vmatprep.subr.mxu0 0.0
        %1133 = vmatpush1.msra.mxu0 0.0
        %1134 = vmatprep.subr.mxu0 0.0
        %1135 = vmatpush1.msra.mxu0 0.0
        %1136 = vmatprep.subr.mxu0 0.0
        %1137 = vmatpush1.msra.mxu0 0.0
        %1138 = vmatprep.subr.mxu0 0.0
        %1139 = vmatpush1.msra.mxu0 0.0
        %1140 = vmatprep.subr.mxu0 0.0
        %1141 = vmatpush1.msra.mxu0 0.0
        %1142 = vmatprep.subr.mxu0 0.0
        %1143 = vmatpush1.msra.mxu0 0.0
        %1144 = vmatprep.subr.mxu0 0.0
        %1145 = vmatpush1.msra.mxu0 0.0
        %1146 = vmatprep.subr.mxu0 0.0
        %1147 = vmatpush1.msra.mxu0 0.0
        %1148 = vmatprep.subr.mxu0 0.0
        %1149 = vmatpush1.msra.mxu0 0.0
        %1150 = vmatprep.subr.mxu0 0.0
        %1151 = vmatpush1.msra.mxu0 0.0
        %1152 = vmatprep.subr.mxu0 0.0
        %1153 = vmatpush1.msra.mxu0 0.0
        %1154 = vmatprep.subr.mxu0 0.0
        %1155 = vmatpush1.msra.mxu0 0.0
        %1156 = vmatprep.subr.mxu0 0.0
        %1157 = vmatpush1.msra.mxu0 0.0
        %1158 = vmatprep.subr.mxu0 0.0
        %1159 = vmatpush1.msra.mxu0 0.0
        %1160 = vmatprep.mubr.f32.mxu0 0.0
        %1161 = vmatmul.mubr.f32.gmra.mrb[0].mxu0 %v1094
        %v1162 = vpop.f32.mrb[0].mxu0
        %v1163 = vadd.f32 0.0, %v1162
        %v1164 = vpop.f32.mrb[0].mxu0
        %1165 = vdwg.mxu0
        %1167 = vrot.lane.b32.xlu0 %v1011, 8
        %v1168 = vpop.permute.xlu0 %1167
        %1171 = vrot.lane.b32.xlu0 %v1087, 16
        %v1172 = vpop.permute.xlu0 %1171
        %1175 = vrot.lane.b32.xlu0 %v1163, 24
        %v1176 = vpop.permute.xlu0 %1175
        %v1178 = vsel %vm501, %v935, %v1168
        %vm1179 = vcmask 130048
        %v1180 = vsel %vm1179, %v1178, %v1172
        %vm1181 = vcmask 195584
        %v1182 = vsel %vm1181, %v1180, %v1176
        %1183 = vst.msk [vmem:[#allocation3] sm:$0xff] %vm411, %v1182
        %v1184 = vld [vmem:[#allocation3] sm:$0xff]
        %v1185 = vld [vmem:[#allocation10] sm:$0xff]
        %v1186 = vld [vmem:[#allocation10 + $0x8] sm:$0xff]
        %v1187 = vld [vmem:[#allocation10 + $0x10] sm:$0xff]
        %v1188 = vld [vmem:[#allocation10 + $0x18] sm:$0xff]
        %v1189 = vld [vmem:[#allocation12] sm:$0x1]
        %v1191 = vlaneseq
        %v1192 = vshrl.u32 %v1191, 7
        %v1193 = vsub.s32 0, %v1192
        %v1194 = vrot.slane %v1189, %v1193
        %v1197 = vsel %vm411, %v1184, 0
        %1199 = vmatprep.subr.mxu0 0.0
        %1200 = vmatpush1.msra.mxu0 %v1185
        %1201 = vmatprep.subr.mxu0 0.0
        %1202 = vmatpush1.msra.mxu0 %v1186
        %1203 = vmatprep.subr.mxu0 0.0
        %1204 = vmatpush1.msra.mxu0 %v1187
        %1205 = vmatprep.subr.mxu0 0.0
        %1206 = vmatpush1.msra.mxu0 %v1188
        %1207 = vmatprep.subr.mxu0 0.0
        %1208 = vmatpush1.msra.mxu0 0.0
        %1209 = vmatprep.subr.mxu0 0.0
        %1210 = vmatpush1.msra.mxu0 0.0
        %1211 = vmatprep.subr.mxu0 0.0
        %1212 = vmatpush1.msra.mxu0 0.0
        %1213 = vmatprep.subr.mxu0 0.0
        %1214 = vmatpush1.msra.mxu0 0.0
        %1215 = vmatprep.subr.mxu0 0.0
        %1216 = vmatpush1.msra.mxu0 0.0
        %1217 = vmatprep.subr.mxu0 0.0
        %1218 = vmatpush1.msra.mxu0 0.0
        %1219 = vmatprep.subr.mxu0 0.0
        %1220 = vmatpush1.msra.mxu0 0.0
        %1221 = vmatprep.subr.mxu0 0.0
        %1222 = vmatpush1.msra.mxu0 0.0
        %1223 = vmatprep.subr.mxu0 0.0
        %1224 = vmatpush1.msra.mxu0 0.0
        %1225 = vmatprep.subr.mxu0 0.0
        %1226 = vmatpush1.msra.mxu0 0.0
        %1227 = vmatprep.subr.mxu0 0.0
        %1228 = vmatpush1.msra.mxu0 0.0
        %1229 = vmatprep.subr.mxu0 0.0
        %1230 = vmatpush1.msra.mxu0 0.0
        %1231 = vmatprep.subr.mxu0 0.0
        %1232 = vmatpush1.msra.mxu0 0.0
        %1233 = vmatprep.subr.mxu0 0.0
        %1234 = vmatpush1.msra.mxu0 0.0
        %1235 = vmatprep.subr.mxu0 0.0
        %1236 = vmatpush1.msra.mxu0 0.0
        %1237 = vmatprep.subr.mxu0 0.0
        %1238 = vmatpush1.msra.mxu0 0.0
        %1239 = vmatprep.subr.mxu0 0.0
        %1240 = vmatpush1.msra.mxu0 0.0
        %1241 = vmatprep.subr.mxu0 0.0
        %1242 = vmatpush1.msra.mxu0 0.0
        %1243 = vmatprep.subr.mxu0 0.0
        %1244 = vmatpush1.msra.mxu0 0.0
        %1245 = vmatprep.subr.mxu0 0.0
        %1246 = vmatpush1.msra.mxu0 0.0
        %1247 = vmatprep.subr.mxu0 0.0
        %1248 = vmatpush1.msra.mxu0 0.0
        %1249 = vmatprep.subr.mxu0 0.0
        %1250 = vmatpush1.msra.mxu0 0.0
        %1251 = vmatprep.subr.mxu0 0.0
        %1252 = vmatpush1.msra.mxu0 0.0
        %1253 = vmatprep.subr.mxu0 0.0
        %1254 = vmatpush1.msra.mxu0 0.0
        %1255 = vmatprep.subr.mxu0 0.0
        %1256 = vmatpush1.msra.mxu0 0.0
        %1257 = vmatprep.subr.mxu0 0.0
        %1258 = vmatpush1.msra.mxu0 0.0
        %1259 = vmatprep.subr.mxu0 0.0
        %1260 = vmatpush1.msra.mxu0 0.0
        %1261 = vmatprep.subr.mxu0 0.0
        %1262 = vmatpush1.msra.mxu0 0.0
        %1263 = vmatprep.mubr.f32.mxu0 0.0
        %1264 = vmatmul.mubr.f32.gmra.mrb[0].mxu0 %v1197
        %v1265 = vpop.f32.mrb[0].mxu0
        %v1266 = vadd.f32 %v1194, %v1265
        %v1267 = vpop.f32.mrb[0].mxu0
        %1268 = vdwg.mxu0
        %1269 = vst.msk [vmem:[%s391] sm:$0xff] %vm411, %v1266
        %s1270 = sand.u32 %s177, 1
        %s1271 = scalar_lea.sflag [#allocation6], %s1270
        %s1272 = sand.u32 %s177, 1
        %s1273 = smul.addr %s1272, 8
        %s1274 = scalar_lea.vmem [#allocation15], %s1273
        %s1275 = sand.u32 %s203, 1
        %s1276 = scalar_lea.sflag [#allocation17], %s1275
        %s1277 = sand.u32 %s203, 1
        %s1278 = smul.addr %s1277, 8
        %s1279 = scalar_lea.vmem [#allocation16], %s1278
        // Predicated region
        $region69: #{tpu_custom_call.1} parent=43 // pred_check
          %p1280 = pneg %p187
        $region70: #{tpu_custom_call.1} parent=43 // pred_check_branch
          %1282 = sbr.rel (%p1280) target = $region72
        $region71: #{tpu_custom_call.1} parent=43 // pred_region
          %s1284 = ssub.s32 128, 128
          %1285 = vsyncadd %s1271, %s1284
          %s1286 = smul.addr %s33, 128
          %s1287 = scalar_lea.hbm %s6, %s1286
          %s1289 = sshll.u32 %s1274, 4
          %s1290 = int_to_ptr.vmem [resolvable:$true] %s1289
          %1292 = dma.vmem_to_hbm [thread:$0]  %s1290, 128, %s1287, %s1271
        $region72: #{tpu_custom_call.1} parent=43 // pred_fallthru
          _
        // Predicated region
        $region73: #{tpu_custom_call.1} parent=43 // pred_check
          %p1293 = pneg %p213
        $region74: #{tpu_custom_call.1} parent=43 // pred_check_branch
          %1295 = sbr.rel (%p1293) target = $region76
        $region75: #{tpu_custom_call.1} parent=43 // pred_region
          %s1297 = ssub.s32 128, 128
          %1298 = vsyncadd %s1276, %s1297
          %s1299 = smul.addr %s33, 128
          %s1300 = scalar_lea.hbm %s7, %s1299
          %s1302 = sshll.u32 %s1279, 4
          %s1303 = int_to_ptr.vmem [resolvable:$true] %s1302
          %1305 = dma.vmem_to_hbm [thread:$0]  %s1303, 128, %s1300, %s1276
        $region76: #{tpu_custom_call.1} parent=43 // pred_fallthru
          _
      $region44: #{tpu_custom_call.1} parent=5 // pred_fallthru
        _
      %p1306 = scmp.le.s32.totalorder 2, %s28
      // Predicated region
      $region77: #{tpu_custom_call.1} parent=5 // pred_check
        %p1307 = pneg %p1306
      $region78: #{tpu_custom_call.1} parent=5 // pred_check_branch
        %1309 = sbr.rel (%p1307) target = $region80
      $region79: #{tpu_custom_call.1} parent=5 // pred_region
        %s1310 = ssub.s32 %s28, 2
        // Predicated region
        $region81: #{tpu_custom_call.1} parent=79 // pred_check
          %p1311 = pneg %p193
        $region82: #{tpu_custom_call.1} parent=79 // pred_check_branch
          %1313 = sbr.rel (%p1311) target = $region84
        $region83: #{tpu_custom_call.1} parent=79 // pred_region
          %s1314 = sand.u32 %s178, 1
          %s1315 = scalar_lea.sflag [#allocation6], %s1314
          %s1316 = sand.u32 %s178, 1
          %s1317 = smul.addr %s1316, 8
          %s1318 = scalar_lea.vmem [#allocation15], %s1317
          %1319 = dma.done %s1315, 128
        $region84: #{tpu_custom_call.1} parent=79 // pred_fallthru
          _
        // Predicated region
        $region85: #{tpu_custom_call.1} parent=79 // pred_check
          %p1320 = pneg %p219
        $region86: #{tpu_custom_call.1} parent=79 // pred_check_branch
          %1322 = sbr.rel (%p1320) target = $region88
        $region87: #{tpu_custom_call.1} parent=79 // pred_region
          %s1323 = sand.u32 %s204, 1
          %s1324 = scalar_lea.sflag [#allocation17], %s1323
          %s1325 = sand.u32 %s204, 1
          %s1326 = smul.addr %s1325, 8
          %s1327 = scalar_lea.vmem [#allocation16], %s1326
          %1328 = dma.done %s1324, 128
        $region88: #{tpu_custom_call.1} parent=79 // pred_fallthru
          _
      $region80: #{tpu_custom_call.1} parent=5 // pred_fallthru
        _
    $region6: #{tpu_custom_call.1} parent=1 // loop_footer
      %s32 = sadd.s32 1, %s28
    $region7: #{tpu_custom_call.1} parent=1 // loop_footer_branch
      %27 = sbr.rel target = $region3
    $region8: #{tpu_custom_call.1} parent=1 // loop_exit
      _
    %1329 = vsyncpa [#allocation5], 1
    %s1330 = scalar_lea.sflag [#allocation5], 1
    %1331 = vsyncpa %s1330, 1
    %1332 = vsyncpa [#allocation8], 1
    %1333 = vsyncpa [#allocation11], 1
    %1334 = vsyncpa [#allocation14], 1
    %s1335 = scalar_lea.sflag [#allocation14], 1
    %1336 = vsyncpa %s1335, 1
    %1337 = vsyncpa [#allocation6], 1
    %s1338 = scalar_lea.sflag [#allocation6], 1
    %1339 = vsyncpa %s1338, 1
    %1340 = vsyncpa [#allocation17], 1
    %s1341 = scalar_lea.sflag [#allocation17], 1
    %1342 = vsyncpa %s1341, 1

</llo_original>
